<compile_context>
chip_gen: v7x
topology: tpu7x:2x2x1
jax: 0.10.0
libtpu: 0.0.40
codegen_flags: <defaults>
</compile_context>

<pallas_src>
import functools

import jax
import jax.numpy as jnp
from jax import lax
from jax.experimental import pallas as pl
from jax.experimental.pallas import tpu as pltpu


def _dwconv_kernel(x_ref, w_ref, b_ref, o_ref, xpad_ref):
    """Depthwise 3x3 conv for one (batch, channel-tile) block.

    x_ref    : (1, H, W, TC)       unpadded input block (VMEM)
    w_ref    : (3, 3, TC)          per-channel 3x3 filters (VMEM)
    b_ref    : (1, TC)             per-channel bias (VMEM)
    o_ref    : (1, H, W, TC)       output block (VMEM)
    xpad_ref : (H+2, W+2, TC) f32  scratch holding the zero-haloed block
    """
    H = o_ref.shape[1]
    W = o_ref.shape[2]
    TC = o_ref.shape[3]

    # --- build the zero-padded block in VMEM: zero the 1-pixel halo strips
    #     (cheap masked VMEM stores), then copy the interior once ------------
    zrow = jnp.zeros((1, W + 2, TC), jnp.float32)
    zcol = jnp.zeros((H + 2, 1, TC), jnp.float32)
    xpad_ref[0:1, :, :] = zrow
    xpad_ref[H + 1:H + 2, :, :] = zrow
    xpad_ref[:, 0:1, :] = zcol
    xpad_ref[:, W + 1:W + 2, :] = zcol
    xpad_ref[1:H + 1, 1:W + 1, :] = x_ref[0].astype(jnp.float32)

    # --- 3x3 depthwise accumulation on the VPU, f32 accumulator -------------
    w = w_ref[...].astype(jnp.float32)            # (3, 3, TC), cast once
    bias = b_ref[0, :].astype(jnp.float32)        # (TC,)
    acc = jnp.broadcast_to(bias, (H, W, TC))      # bias folded into acc init
    for dh in range(3):
        for dw in range(3):
            window = xpad_ref[dh:dh + H, dw:dw + W, :]   # already f32
            acc = acc + window * w[dh, dw, :]

    o_ref[0] = acc.astype(o_ref.dtype)


def dwconv(x, weight, bias, H, W, *, channel_tile=128):
    """Pallas DWConv forward.

    x      : (B, N, C) with N == H * W
    weight : (3, 3, C)  depthwise filters (PyTorch (C,1,3,3) transposed)
    bias   : (C,)
    returns (B, N, C)
    """
    B, N, C = x.shape
    assert N == H * W, "token count must equal H * W"
    assert weight.shape == (3, 3, C)
    assert bias.shape == (C,)

    # Lane-dense channel count: pad channels up to a multiple of 128 only when
    # needed.  Padded lanes get zero weight/bias and are sliced off below.
    lanes = 128
    c_pad = ((C + lanes - 1) // lanes) * lanes
    if c_pad != C:
        extra = c_pad - C
        x = jnp.pad(x, ((0, 0), (0, 0), (0, extra)))
        weight = jnp.pad(weight, ((0, 0), (0, 0), (0, extra)))
        bias = jnp.pad(bias, ((0, extra),))

    tc = channel_tile
    if c_pad % tc != 0:
        tc = lanes
    tc = min(tc, c_pad)
    num_c = c_pad // tc

    # Free reshape (no spatial padding in HBM).
    x_sp = x.reshape(B, H, W, c_pad)
    bias2 = bias.reshape(1, c_pad)

    itemsize = jnp.dtype(x.dtype).itemsize
    cost = pl.CostEstimate(
        flops=18 * B * H * W * c_pad,
        transcendentals=0,
        bytes_accessed=(2 * B * H * W * c_pad + 10 * c_pad) * itemsize,
    )

    out = pl.pallas_call(
        _dwconv_kernel,
        out_shape=jax.ShapeDtypeStruct((B, H, W, c_pad), x.dtype),
        grid_spec=pltpu.PrefetchScalarGridSpec(
            num_scalar_prefetch=0,
            grid=(B, num_c),
            in_specs=[
                pl.BlockSpec((1, H, W, tc), lambda b, c: (b, 0, 0, c)),
                pl.BlockSpec((3, 3, tc), lambda b, c: (0, 0, c)),
                pl.BlockSpec((1, tc), lambda b, c: (0, c)),
            ],
            out_specs=pl.BlockSpec((1, H, W, tc), lambda b, c: (b, 0, 0, c)),
            scratch_shapes=[pltpu.VMEM((H + 2, W + 2, tc), jnp.float32)],
        ),
        compiler_params=pltpu.CompilerParams(
            dimension_semantics=("parallel", "parallel")),
        cost_estimate=cost,
    )(x_sp, weight, bias2)

    out = out.reshape(B, N, c_pad)
    if c_pad != C:
        out = out[:, :, :C]
    return out


def _reference_dwconv(x, weight, bias, H, W):
    """Pure-JAX reference (matches PyTorch nn.Conv2d(C, C, 3, 1, 1, groups=C))."""
    B, N, C = x.shape
    x_nchw = jnp.transpose(x, (0, 2, 1)).reshape(B, C, H, W)
    w_oihw = jnp.transpose(weight, (2, 0, 1))[:, None, :, :]   # (C,1,3,3)
    y = lax.conv_general_dilated(
        x_nchw, w_oihw,
        window_strides=(1, 1), padding=((1, 1), (1, 1)),
        dimension_numbers=("NCHW", "OIHW", "NCHW"),
        feature_group_count=C)
    y = y + bias[None, :, None, None]
    return jnp.transpose(y.reshape(B, C, N), (0, 2, 1))


if __name__ == "__main__":
    B, H, W, C = 2, 16, 16, 32
    N = H * W

    key = jax.random.PRNGKey(0)
    kx, kw, kb = jax.random.split(key, 3)

    x = jax.random.normal(kx, (B, N, C), dtype=jnp.float32)
    weight = jax.random.normal(kw, (3, 3, C), dtype=jnp.float32) * 0.1
    bias = jax.random.normal(kb, (C,), dtype=jnp.float32) * 0.1

    fn = jax.jit(functools.partial(dwconv, H=H, W=W))
    out = jax.block_until_ready(fn(x, weight, bias))

    ref = jax.block_until_ready(_reference_dwconv(x, weight, bias, H, W))
    assert out.shape == (B, N, C)
    assert jnp.allclose(out, ref, atol=1e-4, rtol=1e-4), "mismatch vs reference"

    print("KERNEL_OK")
</pallas_src>

<mosaic_0001>
module attributes {stable_mosaic.version = 11 : i64} {
  func.func @_dwconv_kernel(%arg0: i32, %arg1: i32, %arg2: memref<1x16x16x128xf32, #tpu.memory_space<vmem>>, %arg3: memref<3x3x128xf32, #tpu.memory_space<vmem>>, %arg4: memref<1x128xf32, #tpu.memory_space<vmem>>, %arg5: memref<1x16x16x128xf32, #tpu.memory_space<vmem>>, %arg6: memref<18x18x128xf32, #tpu.memory_space<vmem>>) attributes {dimension_semantics = [#tpu.dimension_semantics<parallel>, #tpu.dimension_semantics<parallel>], iteration_bounds = array<i64: 2, 1>, scalar_prefetch = 0 : i64, scratch_operands = 1 : i64, tpu.core_type = #tpu.core_type<tc>, window_params = [{transform_indices = @transform_0, window_bounds = array<i64: 1, 16, 16, 128>}, {transform_indices = @transform_1, window_bounds = array<i64: 3, 3, 128>}, {transform_indices = @transform_2, window_bounds = array<i64: 1, 128>}, {transform_indices = @transform_3, window_bounds = array<i64: 1, 16, 16, 128>}]} {
    %cst = arith.constant 0.000000e+00 : f32
    %0 = vector.broadcast %cst : f32 to vector<1x18x128xf32>
    %cst_0 = arith.constant 0.000000e+00 : f32
    %1 = vector.broadcast %cst_0 : f32 to vector<18x1x128xf32>
    %c0 = arith.constant 0 : index
    %c0_1 = arith.constant 0 : index
    %c0_2 = arith.constant 0 : index
    %2 = vector.load %arg6[%c0, %c0_1, %c0_2] : memref<18x18x128xf32, #tpu.memory_space<vmem>>, vector<1x18x128xf32>
    tpu.vector_store %arg6[%c0, %c0_1, %c0_2], %0 {strides = array<i32>} : memref<18x18x128xf32, #tpu.memory_space<vmem>>, vector<1x18x128xf32>,
    %c17 = arith.constant 17 : index
    %c0_3 = arith.constant 0 : index
    %c0_4 = arith.constant 0 : index
    %3 = vector.load %arg6[%c17, %c0_3, %c0_4] : memref<18x18x128xf32, #tpu.memory_space<vmem>>, vector<1x18x128xf32>
    tpu.vector_store %arg6[%c17, %c0_3, %c0_4], %0 {strides = array<i32>} : memref<18x18x128xf32, #tpu.memory_space<vmem>>, vector<1x18x128xf32>,
    %c0_5 = arith.constant 0 : index
    %c0_6 = arith.constant 0 : index
    %c0_7 = arith.constant 0 : index
    %4 = vector.load %arg6[%c0_5, %c0_6, %c0_7] : memref<18x18x128xf32, #tpu.memory_space<vmem>>, vector<18x1x128xf32>
    tpu.vector_store %arg6[%c0_5, %c0_6, %c0_7], %1 {strides = array<i32>} : memref<18x18x128xf32, #tpu.memory_space<vmem>>, vector<18x1x128xf32>,
    %c0_8 = arith.constant 0 : index
    %c17_9 = arith.constant 17 : index
    %c0_10 = arith.constant 0 : index
    %5 = vector.load %arg6[%c0_8, %c17_9, %c0_10] : memref<18x18x128xf32, #tpu.memory_space<vmem>>, vector<18x1x128xf32>
    tpu.vector_store %arg6[%c0_8, %c17_9, %c0_10], %1 {strides = array<i32>} : memref<18x18x128xf32, #tpu.memory_space<vmem>>, vector<18x1x128xf32>,
    %c0_11 = arith.constant 0 : index
    %c0_12 = arith.constant 0 : index
    %c0_13 = arith.constant 0 : index
    %c0_14 = arith.constant 0 : index
    %6 = vector.load %arg2[%c0_11, %c0_12, %c0_13, %c0_14] : memref<1x16x16x128xf32, #tpu.memory_space<vmem>>, vector<1x16x16x128xf32>
    %7 = vector.shape_cast %6 : vector<1x16x16x128xf32> to vector<16x16x128xf32>
    %c1 = arith.constant 1 : index
    %c1_15 = arith.constant 1 : index
    %c0_16 = arith.constant 0 : index
    %8 = vector.load %arg6[%c1, %c1_15, %c0_16] : memref<18x18x128xf32, #tpu.memory_space<vmem>>, vector<16x16x128xf32>
    tpu.vector_store %arg6[%c1, %c1_15, %c0_16], %7 {strides = array<i32>} : memref<18x18x128xf32, #tpu.memory_space<vmem>>, vector<16x16x128xf32>,
    %c0_17 = arith.constant 0 : index
    %c0_18 = arith.constant 0 : index
    %c0_19 = arith.constant 0 : index
    %9 = vector.load %arg3[%c0_17, %c0_18, %c0_19] : memref<3x3x128xf32, #tpu.memory_space<vmem>>, vector<3x3x128xf32>
    %c0_20 = arith.constant 0 : index
    %c0_21 = arith.constant 0 : index
    %10 = vector.load %arg4[%c0_20, %c0_21] : memref<1x128xf32, #tpu.memory_space<vmem>>, vector<1x128xf32>
    %11 = vector.shape_cast %10 : vector<1x128xf32> to vector<128xf32>
    %12 = vector.shape_cast %11 : vector<128xf32> to vector<1x1x128xf32>
    %13 = vector.broadcast %12 : vector<1x1x128xf32> to vector<16x16x128xf32>
    %c0_22 = arith.constant 0 : index
    %c0_23 = arith.constant 0 : index
    %c0_24 = arith.constant 0 : index
    %14 = vector.load %arg6[%c0_22, %c0_23, %c0_24] : memref<18x18x128xf32, #tpu.memory_space<vmem>>, vector<16x16x128xf32>
    %15 = vector.extract_strided_slice %9 {offsets = [0, 0, 0], sizes = [1, 1, 128], strides = [1, 1, 1]} : vector<3x3x128xf32> to vector<1x1x128xf32>
    %16 = vector.shape_cast %15 : vector<1x1x128xf32> to vector<128xf32>
    %17 = vector.shape_cast %16 : vector<128xf32> to vector<1x1x128xf32>
    %18 = vector.broadcast %17 : vector<1x1x128xf32> to vector<16x16x128xf32>
    %19 = arith.mulf %14, %18 : vector<16x16x128xf32>
    %20 = arith.addf %13, %19 : vector<16x16x128xf32>
    %c0_25 = arith.constant 0 : index
    %c1_26 = arith.constant 1 : index
    %c0_27 = arith.constant 0 : index
    %21 = vector.load %arg6[%c0_25, %c1_26, %c0_27] : memref<18x18x128xf32, #tpu.memory_space<vmem>>, vector<16x16x128xf32>
    %22 = vector.extract_strided_slice %9 {offsets = [0, 1, 0], sizes = [1, 1, 128], strides = [1, 1, 1]} : vector<3x3x128xf32> to vector<1x1x128xf32>
    %23 = vector.shape_cast %22 : vector<1x1x128xf32> to vector<128xf32>
    %24 = vector.shape_cast %23 : vector<128xf32> to vector<1x1x128xf32>
    %25 = vector.broadcast %24 : vector<1x1x128xf32> to vector<16x16x128xf32>
    %26 = arith.mulf %21, %25 : vector<16x16x128xf32>
    %27 = arith.addf %20, %26 : vector<16x16x128xf32>
    %c0_28 = arith.constant 0 : index
    %c2 = arith.constant 2 : index
    %c0_29 = arith.constant 0 : index
    %28 = vector.load %arg6[%c0_28, %c2, %c0_29] : memref<18x18x128xf32, #tpu.memory_space<vmem>>, vector<16x16x128xf32>
    %29 = vector.extract_strided_slice %9 {offsets = [0, 2, 0], sizes = [1, 1, 128], strides = [1, 1, 1]} : vector<3x3x128xf32> to vector<1x1x128xf32>
    %30 = vector.shape_cast %29 : vector<1x1x128xf32> to vector<128xf32>
    %31 = vector.shape_cast %30 : vector<128xf32> to vector<1x1x128xf32>
    %32 = vector.broadcast %31 : vector<1x1x128xf32> to vector<16x16x128xf32>
    %33 = arith.mulf %28, %32 : vector<16x16x128xf32>
    %34 = arith.addf %27, %33 : vector<16x16x128xf32>
    %c1_30 = arith.constant 1 : index
    %c0_31 = arith.constant 0 : index
    %c0_32 = arith.constant 0 : index
    %35 = vector.load %arg6[%c1_30, %c0_31, %c0_32] : memref<18x18x128xf32, #tpu.memory_space<vmem>>, vector<16x16x128xf32>
    %36 = vector.extract_strided_slice %9 {offsets = [1, 0, 0], sizes = [1, 1, 128], strides = [1, 1, 1]} : vector<3x3x128xf32> to vector<1x1x128xf32>
    %37 = vector.shape_cast %36 : vector<1x1x128xf32> to vector<128xf32>
    %38 = vector.shape_cast %37 : vector<128xf32> to vector<1x1x128xf32>
    %39 = vector.broadcast %38 : vector<1x1x128xf32> to vector<16x16x128xf32>
    %40 = arith.mulf %35, %39 : vector<16x16x128xf32>
    %41 = arith.addf %34, %40 : vector<16x16x128xf32>
    %c1_33 = arith.constant 1 : index
    %c1_34 = arith.constant 1 : index
    %c0_35 = arith.constant 0 : index
    %42 = vector.load %arg6[%c1_33, %c1_34, %c0_35] : memref<18x18x128xf32, #tpu.memory_space<vmem>>, vector<16x16x128xf32>
    %43 = vector.extract_strided_slice %9 {offsets = [1, 1, 0], sizes = [1, 1, 128], strides = [1, 1, 1]} : vector<3x3x128xf32> to vector<1x1x128xf32>
    %44 = vector.shape_cast %43 : vector<1x1x128xf32> to vector<128xf32>
    %45 = vector.shape_cast %44 : vector<128xf32> to vector<1x1x128xf32>
    %46 = vector.broadcast %45 : vector<1x1x128xf32> to vector<16x16x128xf32>
    %47 = arith.mulf %42, %46 : vector<16x16x128xf32>
    %48 = arith.addf %41, %47 : vector<16x16x128xf32>
    %c1_36 = arith.constant 1 : index
    %c2_37 = arith.constant 2 : index
    %c0_38 = arith.constant 0 : index
    %49 = vector.load %arg6[%c1_36, %c2_37, %c0_38] : memref<18x18x128xf32, #tpu.memory_space<vmem>>, vector<16x16x128xf32>
    %50 = vector.extract_strided_slice %9 {offsets = [1, 2, 0], sizes = [1, 1, 128], strides = [1, 1, 1]} : vector<3x3x128xf32> to vector<1x1x128xf32>
    %51 = vector.shape_cast %50 : vector<1x1x128xf32> to vector<128xf32>
    %52 = vector.shape_cast %51 : vector<128xf32> to vector<1x1x128xf32>
    %53 = vector.broadcast %52 : vector<1x1x128xf32> to vector<16x16x128xf32>
    %54 = arith.mulf %49, %53 : vector<16x16x128xf32>
    %55 = arith.addf %48, %54 : vector<16x16x128xf32>
    %c2_39 = arith.constant 2 : index
    %c0_40 = arith.constant 0 : index
    %c0_41 = arith.constant 0 : index
    %56 = vector.load %arg6[%c2_39, %c0_40, %c0_41] : memref<18x18x128xf32, #tpu.memory_space<vmem>>, vector<16x16x128xf32>
    %57 = vector.extract_strided_slice %9 {offsets = [2, 0, 0], sizes = [1, 1, 128], strides = [1, 1, 1]} : vector<3x3x128xf32> to vector<1x1x128xf32>
    %58 = vector.shape_cast %57 : vector<1x1x128xf32> to vector<128xf32>
    %59 = vector.shape_cast %58 : vector<128xf32> to vector<1x1x128xf32>
    %60 = vector.broadcast %59 : vector<1x1x128xf32> to vector<16x16x128xf32>
    %61 = arith.mulf %56, %60 : vector<16x16x128xf32>
    %62 = arith.addf %55, %61 : vector<16x16x128xf32>
    %c2_42 = arith.constant 2 : index
    %c1_43 = arith.constant 1 : index
    %c0_44 = arith.constant 0 : index
    %63 = vector.load %arg6[%c2_42, %c1_43, %c0_44] : memref<18x18x128xf32, #tpu.memory_space<vmem>>, vector<16x16x128xf32>
    %64 = vector.extract_strided_slice %9 {offsets = [2, 1, 0], sizes = [1, 1, 128], strides = [1, 1, 1]} : vector<3x3x128xf32> to vector<1x1x128xf32>
    %65 = vector.shape_cast %64 : vector<1x1x128xf32> to vector<128xf32>
    %66 = vector.shape_cast %65 : vector<128xf32> to vector<1x1x128xf32>
    %67 = vector.broadcast %66 : vector<1x1x128xf32> to vector<16x16x128xf32>
    %68 = arith.mulf %63, %67 : vector<16x16x128xf32>
    %69 = arith.addf %62, %68 : vector<16x16x128xf32>
    %c2_45 = arith.constant 2 : index
    %c2_46 = arith.constant 2 : index
    %c0_47 = arith.constant 0 : index
    %70 = vector.load %arg6[%c2_45, %c2_46, %c0_47] : memref<18x18x128xf32, #tpu.memory_space<vmem>>, vector<16x16x128xf32>
    %71 = vector.extract_strided_slice %9 {offsets = [2, 2, 0], sizes = [1, 1, 128], strides = [1, 1, 1]} : vector<3x3x128xf32> to vector<1x1x128xf32>
    %72 = vector.shape_cast %71 : vector<1x1x128xf32> to vector<128xf32>
    %73 = vector.shape_cast %72 : vector<128xf32> to vector<1x1x128xf32>
    %74 = vector.broadcast %73 : vector<1x1x128xf32> to vector<16x16x128xf32>
    %75 = arith.mulf %70, %74 : vector<16x16x128xf32>
    %76 = arith.addf %69, %75 : vector<16x16x128xf32>
    %c0_48 = arith.constant 0 : index
    %c0_49 = arith.constant 0 : index
    %c0_50 = arith.constant 0 : index
    %c0_51 = arith.constant 0 : index
    %77 = vector.load %arg5[%c0_48, %c0_49, %c0_50, %c0_51] : memref<1x16x16x128xf32, #tpu.memory_space<vmem>>, vector<1x16x16x128xf32>
    %78 = vector.shape_cast %77 : vector<1x16x16x128xf32> to vector<16x16x128xf32>
    %79 = vector.shape_cast %76 : vector<16x16x128xf32> to vector<1x16x16x128xf32>
    tpu.vector_store %arg5[%c0_48, %c0_49, %c0_50, %c0_51], %79 {strides = array<i32>} : memref<1x16x16x128xf32, #tpu.memory_space<vmem>>, vector<1x16x16x128xf32>,
    return
  }
  func.func @transform_0(%arg0: i32, %arg1: i32) -> (i32, i32, i32, i32) {
    %c0_i32 = arith.constant 0 : i32
    %c0_i32_0 = arith.constant 0 : i32
    %c0_i32_1 = arith.constant 0 : i32
    return %arg0, %c0_i32, %c0_i32_0, %arg1 : i32, i32, i32, i32
  }
  func.func @transform_1(%arg0: i32, %arg1: i32) -> (i32, i32, i32) {
    %c0_i32 = arith.constant 0 : i32
    %c0_i32_0 = arith.constant 0 : i32
    %c0_i32_1 = arith.constant 0 : i32
    return %c0_i32, %c0_i32_0, %arg1 : i32, i32, i32
  }
  func.func @transform_2(%arg0: i32, %arg1: i32) -> (i32, i32) {
    %c0_i32 = arith.constant 0 : i32
    %c0_i32_0 = arith.constant 0 : i32
    return %c0_i32, %arg1 : i32, i32
  }
  func.func @transform_3(%arg0: i32, %arg1: i32) -> (i32, i32, i32, i32) {
    %c0_i32 = arith.constant 0 : i32
    %c0_i32_0 = arith.constant 0 : i32
    %c0_i32_1 = arith.constant 0 : i32
    return %arg0, %c0_i32, %c0_i32_0, %arg1 : i32, i32, i32, i32
  }
}

</mosaic_0001>

<llo_original>
// kernel: dwconv.1
$region0: #{dwconv.1}
  #allocation0 [shape = 'u32[]', space=smem, size = 0x4, offset = 0x4, fixed_abs, tag = 'smem constant byte address 0x4 - core index']
  #allocation1 [shape = 'u32[144,128]{1,0:T(1,128)}', space=vmem, size = 0x12000, scoped, tag = 'internal scratch']
  #allocation2 [shape = 'f32[18,18,128]{2,1,0:T(8,128)}', space=vmem, size = 0x36000, scoped, tag = 'scratch operand']
  %s0 = inlined_call_operand.vmem [shape: f32[2,16,16,128], index: 0, kind: input, shape index: {}]
  %s1 = inlined_call_operand.vmem [shape: f32[3,3,128], index: 1, kind: input, shape index: {}]
  %s2 = inlined_call_operand.vmem [shape: f32[1,128], index: 2, kind: input, shape index: {}]
  %s3 = inlined_call_operand.vmem [shape: f32[2,16,16,128], index: 3, kind: output, shape index: {}]
  %s4 = sld [smem:[#allocation0]]
  $region45: #{dwconv.1} parent=0
    _
  %s6 = ssub.s32 1, %s4
  %s7 = scalar_select 0, %s6, %s4
  loop: start=0, step=1, limit=4
  $region2: #{dwconv.1} parent=0 // loop_pre_header
    _
  $region3: #{dwconv.1} parent=0 // loop_header
    %s9 = sphi 0, %s13
    %p10 = scmp.ge.s32.totalorder %s9, 4
    %s16 = sphi 0, %s28
    %s17 = sphi 0, %s24
    %s18 = sphi 0, %s16
    %s19 = sphi 0, %s17
    %s20 = sphi 0, %s18
    %s21 = sphi 0, %s19
    %s33 = sphi 0, %s35
    %s36 = sphi 0, %s33
    %s37 = sphi 0, %s36
    %s53 = sphi 0, %s37
    %s59 = sphi 0, %s61
    %s62 = sphi 0, %s59
    %s63 = sphi 0, %s62
    %s79 = sphi 0, %s63
    %s85 = sphi 0, %s87
    %s88 = sphi 0, %s85
    %s89 = sphi 0, %s88
    %s105 = sphi 0, %s89
    %s113 = sphi 0, %s115
    %s116 = sphi 0, %s113
    %s117 = sphi 0, %s116
    %s133 = sphi 0, %s117
  $region4: #{dwconv.1} parent=0 // loop_header_branch
    %12 = sbr.rel (%p10) target = $region8
  $region5: #{dwconv.1} parent=0 // loop_body
    %s14 = ssub.s32 %s9, 1
    %s15 = ssub.s32 %s9, 2
    %s22 = sadd.s32 1, %s17
    %p23 = scmp.ge.s32.totalorder %s22, 1
    %s24 = scalar_select %p23, 0, %s22
    %s25 = sadd.s32 1, %s16
    %s26 = scalar_select %p23, %s25, %s16
    %p27 = scmp.ge.s32.totalorder %s26, 2
    %s28 = scalar_select %p27, 0, %s26
    %s29 = ssub.s32 %s16, %s28
    %s30 = ssub.s32 %s17, %s24
    %s31 = sor.u32 %s29, %s30
    %p32 = scmp.eq.s32.totalorder %s31, 0
    %s34 = sadd.s32 %s33, 1
    %s35 = scalar_select %p32, %s33, %s34
    %p38 = pneg %p32
    %p39 = scmp.eq.s32.totalorder %s9, 1
    %p40 = por %p38, %p39
    %p41 = scmp.ne.s32.totalorder %s33, %s36
    %p42 = scmp.eq.s32.totalorder %s9, 0
    %p43 = por %p41, %p42
    %p44 = scmp.ne.s32.totalorder %s33, %s36
    %p45 = scmp.eq.s32.totalorder %s14, 1
    %p46 = por %p44, %p45
    %p47 = scmp.ne.s32.totalorder %s36, %s37
    %p48 = scmp.eq.s32.totalorder %s14, 0
    %p49 = por %p47, %p48
    %p50 = scmp.ne.s32.totalorder %s36, %s37
    %p51 = scmp.eq.s32.totalorder %s15, 1
    %p52 = por %p50, %p51
    %p54 = scmp.ne.s32.totalorder %s37, %s53
    %p55 = scmp.eq.s32.totalorder %s15, 0
    %p56 = por %p54, %p55
    %s57 = ssub.s32 %s17, %s24
    %p58 = scmp.eq.s32.totalorder %s57, 0
    %s60 = sadd.s32 %s59, 1
    %s61 = scalar_select %p58, %s59, %s60
    %p64 = pneg %p58
    %p65 = scmp.eq.s32.totalorder %s9, 1
    %p66 = por %p64, %p65
    %p67 = scmp.ne.s32.totalorder %s59, %s62
    %p68 = scmp.eq.s32.totalorder %s9, 0
    %p69 = por %p67, %p68
    %p70 = scmp.ne.s32.totalorder %s59, %s62
    %p71 = scmp.eq.s32.totalorder %s14, 1
    %p72 = por %p70, %p71
    %p73 = scmp.ne.s32.totalorder %s62, %s63
    %p74 = scmp.eq.s32.totalorder %s14, 0
    %p75 = por %p73, %p74
    %p76 = scmp.ne.s32.totalorder %s62, %s63
    %p77 = scmp.eq.s32.totalorder %s15, 1
    %p78 = por %p76, %p77
    %p80 = scmp.ne.s32.totalorder %s63, %s79
    %p81 = scmp.eq.s32.totalorder %s15, 0
    %p82 = por %p80, %p81
    %s83 = ssub.s32 %s17, %s24
    %p84 = scmp.eq.s32.totalorder %s83, 0
    %s86 = sadd.s32 %s85, 1
    %s87 = scalar_select %p84, %s85, %s86
    %p90 = pneg %p84
    %p91 = scmp.eq.s32.totalorder %s9, 1
    %p92 = por %p90, %p91
    %p93 = scmp.ne.s32.totalorder %s85, %s88
    %p94 = scmp.eq.s32.totalorder %s9, 0
    %p95 = por %p93, %p94
    %p96 = scmp.ne.s32.totalorder %s85, %s88
    %p97 = scmp.eq.s32.totalorder %s14, 1
    %p98 = por %p96, %p97
    %p99 = scmp.ne.s32.totalorder %s88, %s89
    %p100 = scmp.eq.s32.totalorder %s14, 0
    %p101 = por %p99, %p100
    %p102 = scmp.ne.s32.totalorder %s88, %s89
    %p103 = scmp.eq.s32.totalorder %s15, 1
    %p104 = por %p102, %p103
    %p106 = scmp.ne.s32.totalorder %s89, %s105
    %p107 = scmp.eq.s32.totalorder %s15, 0
    %p108 = por %p106, %p107
    %s109 = ssub.s32 %s16, %s28
    %s110 = ssub.s32 %s17, %s24
    %s111 = sor.u32 %s109, %s110
    %p112 = scmp.eq.s32.totalorder %s111, 0
    %s114 = sadd.s32 %s113, 1
    %s115 = scalar_select %p112, %s113, %s114
    %p118 = pneg %p112
    %p119 = scmp.eq.s32.totalorder %s9, 1
    %p120 = por %p118, %p119
    %p121 = scmp.ne.s32.totalorder %s113, %s116
    %p122 = scmp.eq.s32.totalorder %s9, 0
    %p123 = por %p121, %p122
    %p124 = scmp.ne.s32.totalorder %s113, %s116
    %p125 = scmp.eq.s32.totalorder %s14, 1
    %p126 = por %p124, %p125
    %p127 = scmp.ne.s32.totalorder %s116, %s117
    %p128 = scmp.eq.s32.totalorder %s14, 0
    %p129 = por %p127, %p128
    %p130 = scmp.ne.s32.totalorder %s116, %s117
    %p131 = scmp.eq.s32.totalorder %s15, 1
    %p132 = por %p130, %p131
    %p134 = scmp.ne.s32.totalorder %s117, %s133
    %p135 = scmp.eq.s32.totalorder %s15, 0
    %p136 = por %p134, %p135
    %p137 = scmp.le.s32.totalorder 1, %s9
    %p138 = scmp.lt.s32.totalorder %s9, 3
    %p139 = pnand %p137, %p138
    %p140 = pneg %p139
    // Predicated region
    $region9: #{dwconv.1} parent=5 // pred_check
      _
    $region10: #{dwconv.1} parent=5 // pred_check_branch
      %142 = sbr.rel (%p139) target = $region12
    $region11: #{dwconv.1} parent=5 // pred_region
      %s143 = ssub.s32 %s9, 1
      // Predicated region
      $region13: #{dwconv.1} parent=11 // pred_check
        %p144 = pneg %p75
      $region14: #{dwconv.1} parent=11 // pred_check_branch
        %146 = sbr.rel (%p144) target = $region16
      $region15: #{dwconv.1} parent=11 // pred_region
        %p147 = scmp.lt.s32.totalorder %s19, 0
        %s148 = scalar_select %p147, %s19, 0
        %s149 = smul.addr %s148, 4
        %s150 = scalar_lea.vmem %s1, %s149
      $region16: #{dwconv.1} parent=11 // pred_fallthru
        _
      // Predicated region
      $region17: #{dwconv.1} parent=11 // pred_check
        %p151 = pneg %p101
      $region18: #{dwconv.1} parent=11 // pred_check_branch
        %153 = sbr.rel (%p151) target = $region20
      $region19: #{dwconv.1} parent=11 // pred_region
        %p154 = scmp.lt.s32.totalorder %s19, 0
        %s155 = scalar_select %p154, %s19, 0
        %s156 = scalar_lea.vmem %s2, %s155
      $region20: #{dwconv.1} parent=11 // pred_fallthru
        _
    $region12: #{dwconv.1} parent=5 // pred_fallthru
      _
    %p157 = scmp.lt.s32.totalorder %s9, 2
    // Predicated region
    $region21: #{dwconv.1} parent=5 // pred_check
      %p158 = pneg %p157
    $region22: #{dwconv.1} parent=5 // pred_check_branch
      %160 = sbr.rel (%p158) target = $region24
    $region23: #{dwconv.1} parent=5 // pred_region
      // Predicated region
      $region25: #{dwconv.1} parent=23 // pred_check
        %p161 = pneg %p43
      $region26: #{dwconv.1} parent=23 // pred_check_branch
        %163 = sbr.rel (%p161) target = $region28
      $region27: #{dwconv.1} parent=23 // pred_region
        %p164 = scmp.lt.s32.totalorder %s16, 1
        %s165 = scalar_select %p164, %s16, 1
        %p166 = scmp.lt.s32.totalorder %s17, 0
        %s167 = scalar_select %p166, %s17, 0
        %s168 = smul.addr %s165, 32
        %s169 = sadd.s32 %s167, %s168
        %s170 = smul.addr %s169, 8
        %s171 = scalar_lea.vmem %s0, %s170
      $region28: #{dwconv.1} parent=23 // pred_fallthru
        _
    $region24: #{dwconv.1} parent=5 // pred_fallthru
      _
    %p172 = scmp.le.s32.totalorder 1, %s9
    %p173 = scmp.lt.s32.totalorder %s9, 3
    %p174 = pnand %p172, %p173
    %p175 = pneg %p174
    // Predicated region
    $region29: #{dwconv.1} parent=5 // pred_check
      _
    $region30: #{dwconv.1} parent=5 // pred_check_branch
      %177 = sbr.rel (%p174) target = $region32
    $region31: #{dwconv.1} parent=5 // pred_region
      %s178 = ssub.s32 %s9, 1
      %p179 = scmp.lt.s32.totalorder %s18, 1
      %s180 = scalar_select %p179, %s18, 1
      %p181 = scmp.lt.s32.totalorder %s19, 0
      %s182 = scalar_select %p181, %s19, 0
      %s183 = smul.addr %s180, 32
      %s184 = sadd.s32 %s182, %s183
      %s185 = smul.addr %s184, 8
      %s186 = scalar_lea.vmem %s0, %s185
      %p187 = pneg %p49
      %p188 = pneg %p46
      %p189 = scmp.lt.s32.totalorder %s19, 0
      %s190 = scalar_select %p189, %s19, 0
      %s191 = smul.addr %s190, 4
      %s192 = scalar_lea.vmem %s1, %s191
      %p193 = pneg %p75
      %p194 = pneg %p72
      %p195 = scmp.lt.s32.totalorder %s19, 0
      %s196 = scalar_select %p195, %s19, 0
      %s197 = scalar_lea.vmem %s2, %s196
      %p198 = pneg %p101
      %p199 = pneg %p98
      %p200 = pneg %p129
      %p201 = pneg %p126
      %p202 = scmp.lt.s32.totalorder %s18, 1
      %s203 = scalar_select %p202, %s18, 1
      %p204 = scmp.lt.s32.totalorder %s19, 0
      %s205 = scalar_select %p204, %s19, 0
      %s206 = smul.addr %s203, 32
      %s207 = sadd.s32 %s205, %s206
      %s208 = smul.addr %s207, 8
      %s209 = scalar_lea.vmem %s3, %s208
      %p210 = scmp.lt.s32.totalorder %s18, 1
      %s211 = scalar_select %p210, %s18, 1
      %p212 = scmp.lt.s32.totalorder %s19, 0
      %s213 = scalar_select %p212, %s19, 0
      %s214 = smul.addr %s211, 32
      %s215 = sadd.s32 %s213, %s214
      %s216 = smul.addr %s215, 8
      %s217 = scalar_lea.vmem %s0, %s216
      %p218 = scmp.lt.s32.totalorder %s19, 0
      %s219 = scalar_select %p218, %s19, 0
      %s220 = smul.addr %s219, 4
      %s221 = scalar_lea.vmem %s1, %s220
      %p222 = scmp.lt.s32.totalorder %s19, 0
      %s223 = scalar_select %p222, %s19, 0
      %s224 = scalar_lea.vmem %s2, %s223
      %p225 = scmp.lt.s32.totalorder %s18, 1
      %s226 = scalar_select %p225, %s18, 1
      %p227 = scmp.lt.s32.totalorder %s19, 0
      %s228 = scalar_select %p227, %s19, 0
      %s229 = smul.addr %s226, 32
      %s230 = sadd.s32 %s228, %s229
      %s231 = smul.addr %s230, 8
      %s232 = scalar_lea.vmem %s3, %s231
      %233 = vst [vmem:[#allocation2] sm:$0xff] 0.0
      %234 = vst [vmem:[#allocation2 + $0x8] sm:$0xff] 0.0
      %235 = vst [vmem:[#allocation2 + $0x10] sm:$0x3] 0.0
      %s236 = scalar_lea.vmem [#allocation2], 408
      %237 = vst [vmem:[%s236] sm:$0xff] 0.0
      %238 = vst [vmem:[%s236 + $0x8] sm:$0xff] 0.0
      %239 = vst [vmem:[%s236 + $0x10] sm:$0x3] 0.0
      %240 = vst [vmem:[#allocation2] sm:$0x1] 0.0
      %241 = vst [vmem:[#allocation2 + $0x18] sm:$0x1] 0.0
      %242 = vst [vmem:[#allocation2 + $0x30] sm:$0x1] 0.0
      %243 = vst [vmem:[#allocation2 + $0x48] sm:$0x1] 0.0
      %244 = vst [vmem:[#allocation2 + $0x60] sm:$0x1] 0.0
      %245 = vst [vmem:[#allocation2 + $0x78] sm:$0x1] 0.0
      %246 = vst [vmem:[#allocation2 + $0x90] sm:$0x1] 0.0
      %247 = vst [vmem:[#allocation2 + $0xa8] sm:$0x1] 0.0
      %248 = vst [vmem:[#allocation2 + $0xc0] sm:$0x1] 0.0
      %249 = vst [vmem:[#allocation2 + $0xd8] sm:$0x1] 0.0
      %250 = vst [vmem:[#allocation2 + $0xf0] sm:$0x1] 0.0
      %251 = vst [vmem:[#allocation2 + $0x108] sm:$0x1] 0.0
      %252 = vst [vmem:[#allocation2 + $0x120] sm:$0x1] 0.0
      %253 = vst [vmem:[#allocation2 + $0x138] sm:$0x1] 0.0
      %254 = vst [vmem:[#allocation2 + $0x150] sm:$0x1] 0.0
      %255 = vst [vmem:[#allocation2 + $0x168] sm:$0x1] 0.0
      %256 = vst [vmem:[#allocation2 + $0x180] sm:$0x1] 0.0
      %257 = vst [vmem:[#allocation2 + $0x198] sm:$0x1] 0.0
      %258 = vst [vmem:[#allocation2 + $0x11] sm:$0x1] 0.0
      %259 = vst [vmem:[#allocation2 + $0x29] sm:$0x1] 0.0
      %260 = vst [vmem:[#allocation2 + $0x41] sm:$0x1] 0.0
      %261 = vst [vmem:[#allocation2 + $0x59] sm:$0x1] 0.0
      %262 = vst [vmem:[#allocation2 + $0x71] sm:$0x1] 0.0
      %263 = vst [vmem:[#allocation2 + $0x89] sm:$0x1] 0.0
      %264 = vst [vmem:[#allocation2 + $0xa1] sm:$0x1] 0.0
      %265 = vst [vmem:[#allocation2 + $0xb9] sm:$0x1] 0.0
      %266 = vst [vmem:[#allocation2 + $0xd1] sm:$0x1] 0.0
      %267 = vst [vmem:[#allocation2 + $0xe9] sm:$0x1] 0.0
      %268 = vst [vmem:[#allocation2 + $0x101] sm:$0x1] 0.0
      %269 = vst [vmem:[#allocation2 + $0x119] sm:$0x1] 0.0
      %270 = vst [vmem:[#allocation2 + $0x131] sm:$0x1] 0.0
      %271 = vst [vmem:[#allocation2 + $0x149] sm:$0x1] 0.0
      %272 = vst [vmem:[#allocation2 + $0x161] sm:$0x1] 0.0
      %273 = vst [vmem:[#allocation2 + $0x179] sm:$0x1] 0.0
      %274 = vst [vmem:[#allocation2 + $0x191] sm:$0x1] 0.0
      %275 = vst [vmem:[#allocation2 + $0x1a9] sm:$0x1] 0.0
      %v276 = vld [vmem:[%s217] sm:$0xff]
      %v277 = vld [vmem:[%s217 + $0x8] sm:$0xff]
      %v278 = vld [vmem:[%s217 + $0x10] sm:$0xff]
      %v279 = vld [vmem:[%s217 + $0x18] sm:$0xff]
      %v280 = vld [vmem:[%s217 + $0x20] sm:$0xff]
      %v281 = vld [vmem:[%s217 + $0x28] sm:$0xff]
      %v282 = vld [vmem:[%s217 + $0x30] sm:$0xff]
      %v283 = vld [vmem:[%s217 + $0x38] sm:$0xff]
      %v284 = vld [vmem:[%s217 + $0x40] sm:$0xff]
      %v285 = vld [vmem:[%s217 + $0x48] sm:$0xff]
      %v286 = vld [vmem:[%s217 + $0x50] sm:$0xff]
      %v287 = vld [vmem:[%s217 + $0x58] sm:$0xff]
      %v288 = vld [vmem:[%s217 + $0x60] sm:$0xff]
      %v289 = vld [vmem:[%s217 + $0x68] sm:$0xff]
      %v290 = vld [vmem:[%s217 + $0x70] sm:$0xff]
      %v291 = vld [vmem:[%s217 + $0x78] sm:$0xff]
      %v292 = vld [vmem:[%s217 + $0x80] sm:$0xff]
      %v293 = vld [vmem:[%s217 + $0x88] sm:$0xff]
      %v294 = vld [vmem:[%s217 + $0x90] sm:$0xff]
      %v295 = vld [vmem:[%s217 + $0x98] sm:$0xff]
      %v296 = vld [vmem:[%s217 + $0xa0] sm:$0xff]
      %v297 = vld [vmem:[%s217 + $0xa8] sm:$0xff]
      %v298 = vld [vmem:[%s217 + $0xb0] sm:$0xff]
      %v299 = vld [vmem:[%s217 + $0xb8] sm:$0xff]
      %v300 = vld [vmem:[%s217 + $0xc0] sm:$0xff]
      %v301 = vld [vmem:[%s217 + $0xc8] sm:$0xff]
      %v302 = vld [vmem:[%s217 + $0xd0] sm:$0xff]
      %v303 = vld [vmem:[%s217 + $0xd8] sm:$0xff]
      %v304 = vld [vmem:[%s217 + $0xe0] sm:$0xff]
      %v305 = vld [vmem:[%s217 + $0xe8] sm:$0xff]
      %v306 = vld [vmem:[%s217 + $0xf0] sm:$0xff]
      %v307 = vld [vmem:[%s217 + $0xf8] sm:$0xff]
      %s308 = scalar_lea.vmem [#allocation2], 24
      %309 = vst [vmem:[%s308 + $0x1] sm:$0xff] %v276
      %310 = vst [vmem:[%s308 + $0x9] sm:$0xff] %v277
      %311 = vst [vmem:[%s308 + $0x19] sm:$0xff] %v278
      %312 = vst [vmem:[%s308 + $0x21] sm:$0xff] %v279
      %313 = vst [vmem:[%s308 + $0x31] sm:$0xff] %v280
      %314 = vst [vmem:[%s308 + $0x39] sm:$0xff] %v281
      %315 = vst [vmem:[%s308 + $0x49] sm:$0xff] %v282
      %316 = vst [vmem:[%s308 + $0x51] sm:$0xff] %v283
      %317 = vst [vmem:[%s308 + $0x61] sm:$0xff] %v284
      %318 = vst [vmem:[%s308 + $0x69] sm:$0xff] %v285
      %319 = vst [vmem:[%s308 + $0x79] sm:$0xff] %v286
      %320 = vst [vmem:[%s308 + $0x81] sm:$0xff] %v287
      %321 = vst [vmem:[%s308 + $0x91] sm:$0xff] %v288
      %322 = vst [vmem:[%s308 + $0x99] sm:$0xff] %v289
      %323 = vst [vmem:[%s308 + $0xa9] sm:$0xff] %v290
      %324 = vst [vmem:[%s308 + $0xb1] sm:$0xff] %v291
      %325 = vst [vmem:[%s308 + $0xc1] sm:$0xff] %v292
      %326 = vst [vmem:[%s308 + $0xc9] sm:$0xff] %v293
      %327 = vst [vmem:[%s308 + $0xd9] sm:$0xff] %v294
      %328 = vst [vmem:[%s308 + $0xe1] sm:$0xff] %v295
      %329 = vst [vmem:[%s308 + $0xf1] sm:$0xff] %v296
      %330 = vst [vmem:[%s308 + $0xf9] sm:$0xff] %v297
      %331 = vst [vmem:[%s308 + $0x109] sm:$0xff] %v298
      %332 = vst [vmem:[%s308 + $0x111] sm:$0xff] %v299
      %333 = vst [vmem:[%s308 + $0x121] sm:$0xff] %v300
      %334 = vst [vmem:[%s308 + $0x129] sm:$0xff] %v301
      %335 = vst [vmem:[%s308 + $0x139] sm:$0xff] %v302
      %336 = vst [vmem:[%s308 + $0x141] sm:$0xff] %v303
      %337 = vst [vmem:[%s308 + $0x151] sm:$0xff] %v304
      %338 = vst [vmem:[%s308 + $0x159] sm:$0xff] %v305
      %339 = vst [vmem:[%s308 + $0x169] sm:$0xff] %v306
      %340 = vst [vmem:[%s308 + $0x171] sm:$0xff] %v307
      %v341 = vld [vmem:[%s221] sm:$0x7]
      %v342 = vld [vmem:[%s221 + $0x4] sm:$0x7]
      %v343 = vld [vmem:[%s221 + $0x8] sm:$0x7]
      %v344 = vld [vmem:[%s224] sm:$0x1]
      %v346 = vlaneseq
      %v347 = vshrl.u32 %v346, 7
      %v348 = vsub.s32 0, %v347
      %v349 = vrot.slane %v344, %v348
      %v351 = vld [vmem:[#allocation2] sm:$0xff]
      %v352 = vld [vmem:[#allocation2 + $0x8] sm:$0xff]
      %v353 = vld [vmem:[#allocation2 + $0x18] sm:$0xff]
      %v354 = vld [vmem:[#allocation2 + $0x20] sm:$0xff]
      %v355 = vld [vmem:[#allocation2 + $0x30] sm:$0xff]
      %v356 = vld [vmem:[#allocation2 + $0x38] sm:$0xff]
      %v357 = vld [vmem:[#allocation2 + $0x48] sm:$0xff]
      %v358 = vld [vmem:[#allocation2 + $0x50] sm:$0xff]
      %v359 = vld [vmem:[#allocation2 + $0x60] sm:$0xff]
      %v360 = vld [vmem:[#allocation2 + $0x68] sm:$0xff]
      %v361 = vld [vmem:[#allocation2 + $0x78] sm:$0xff]
      %v362 = vld [vmem:[#allocation2 + $0x80] sm:$0xff]
      %v363 = vld [vmem:[#allocation2 + $0x90] sm:$0xff]
      %v364 = vld [vmem:[#allocation2 + $0x98] sm:$0xff]
      %v365 = vld [vmem:[#allocation2 + $0xa8] sm:$0xff]
      %v366 = vld [vmem:[#allocation2 + $0xb0] sm:$0xff]
      %v367 = vld [vmem:[#allocation2 + $0xc0] sm:$0xff]
      %v368 = vld [vmem:[#allocation2 + $0xc8] sm:$0xff]
      %v369 = vld [vmem:[#allocation2 + $0xd8] sm:$0xff]
      %v370 = vld [vmem:[#allocation2 + $0xe0] sm:$0xff]
      %v371 = vld [vmem:[#allocation2 + $0xf0] sm:$0xff]
      %v372 = vld [vmem:[#allocation2 + $0xf8] sm:$0xff]
      %v373 = vld [vmem:[#allocation2 + $0x108] sm:$0xff]
      %v374 = vld [vmem:[#allocation2 + $0x110] sm:$0xff]
      %v375 = vld [vmem:[#allocation2 + $0x120] sm:$0xff]
      %v376 = vld [vmem:[#allocation2 + $0x128] sm:$0xff]
      %v377 = vld [vmem:[#allocation2 + $0x138] sm:$0xff]
      %v378 = vld [vmem:[#allocation2 + $0x140] sm:$0xff]
      %v379 = vld [vmem:[#allocation2 + $0x150] sm:$0xff]
      %v380 = vld [vmem:[#allocation2 + $0x158] sm:$0xff]
      %v381 = vld [vmem:[#allocation2 + $0x168] sm:$0xff]
      %v382 = vld [vmem:[#allocation2 + $0x170] sm:$0xff]
      %v383 = vlaneseq
      %v384 = vshrl.u32 %v383, 7
      %v385 = vsub.s32 0, %v384
      %v386 = vrot.slane %v341, %v385
      %v387 = vmul.f32 %v351, %v386
      %v388 = vmul.f32 %v352, %v386
      %v389 = vmul.f32 %v353, %v386
      %v390 = vmul.f32 %v354, %v386
      %v391 = vmul.f32 %v355, %v386
      %v392 = vmul.f32 %v356, %v386
      %v393 = vmul.f32 %v357, %v386
      %v394 = vmul.f32 %v358, %v386
      %v395 = vmul.f32 %v359, %v386
      %v396 = vmul.f32 %v360, %v386
      %v397 = vmul.f32 %v361, %v386
      %v398 = vmul.f32 %v362, %v386
      %v399 = vmul.f32 %v363, %v386
      %v400 = vmul.f32 %v364, %v386
      %v401 = vmul.f32 %v365, %v386
      %v402 = vmul.f32 %v366, %v386
      %v403 = vmul.f32 %v367, %v386
      %v404 = vmul.f32 %v368, %v386
      %v405 = vmul.f32 %v369, %v386
      %v406 = vmul.f32 %v370, %v386
      %v407 = vmul.f32 %v371, %v386
      %v408 = vmul.f32 %v372, %v386
      %v409 = vmul.f32 %v373, %v386
      %v410 = vmul.f32 %v374, %v386
      %v411 = vmul.f32 %v375, %v386
      %v412 = vmul.f32 %v376, %v386
      %v413 = vmul.f32 %v377, %v386
      %v414 = vmul.f32 %v378, %v386
      %v415 = vmul.f32 %v379, %v386
      %v416 = vmul.f32 %v380, %v386
      %v417 = vmul.f32 %v381, %v386
      %v418 = vmul.f32 %v382, %v386
      %v419 = vadd.f32 %v349, %v387
      %v420 = vadd.f32 %v349, %v388
      %v421 = vadd.f32 %v349, %v389
      %v422 = vadd.f32 %v349, %v390
      %v423 = vadd.f32 %v349, %v391
      %v424 = vadd.f32 %v349, %v392
      %v425 = vadd.f32 %v349, %v393
      %v426 = vadd.f32 %v349, %v394
      %v427 = vadd.f32 %v349, %v395
      %v428 = vadd.f32 %v349, %v396
      %v429 = vadd.f32 %v349, %v397
      %v430 = vadd.f32 %v349, %v398
      %v431 = vadd.f32 %v349, %v399
      %v432 = vadd.f32 %v349, %v400
      %v433 = vadd.f32 %v349, %v401
      %v434 = vadd.f32 %v349, %v402
      %v435 = vadd.f32 %v349, %v403
      %v436 = vadd.f32 %v349, %v404
      %v437 = vadd.f32 %v349, %v405
      %v438 = vadd.f32 %v349, %v406
      %v439 = vadd.f32 %v349, %v407
      %v440 = vadd.f32 %v349, %v408
      %v441 = vadd.f32 %v349, %v409
      %v442 = vadd.f32 %v349, %v410
      %v443 = vadd.f32 %v349, %v411
      %v444 = vadd.f32 %v349, %v412
      %v445 = vadd.f32 %v349, %v413
      %v446 = vadd.f32 %v349, %v414
      %v447 = vadd.f32 %v349, %v415
      %v448 = vadd.f32 %v349, %v416
      %v449 = vadd.f32 %v349, %v417
      %v450 = vadd.f32 %v349, %v418
      %v451 = vld [vmem:[#allocation2 + $0x1] sm:$0xff]
      %v452 = vld [vmem:[#allocation2 + $0x9] sm:$0xff]
      %v453 = vld [vmem:[#allocation2 + $0x19] sm:$0xff]
      %v454 = vld [vmem:[#allocation2 + $0x21] sm:$0xff]
      %v455 = vld [vmem:[#allocation2 + $0x31] sm:$0xff]
      %v456 = vld [vmem:[#allocation2 + $0x39] sm:$0xff]
      %v457 = vld [vmem:[#allocation2 + $0x49] sm:$0xff]
      %v458 = vld [vmem:[#allocation2 + $0x51] sm:$0xff]
      %v459 = vld [vmem:[#allocation2 + $0x61] sm:$0xff]
      %v460 = vld [vmem:[#allocation2 + $0x69] sm:$0xff]
      %v461 = vld [vmem:[#allocation2 + $0x79] sm:$0xff]
      %v462 = vld [vmem:[#allocation2 + $0x81] sm:$0xff]
      %v463 = vld [vmem:[#allocation2 + $0x91] sm:$0xff]
      %v464 = vld [vmem:[#allocation2 + $0x99] sm:$0xff]
      %v465 = vld [vmem:[#allocation2 + $0xa9] sm:$0xff]
      %v466 = vld [vmem:[#allocation2 + $0xb1] sm:$0xff]
      %v467 = vld [vmem:[#allocation2 + $0xc1] sm:$0xff]
      %v468 = vld [vmem:[#allocation2 + $0xc9] sm:$0xff]
      %v469 = vld [vmem:[#allocation2 + $0xd9] sm:$0xff]
      %v470 = vld [vmem:[#allocation2 + $0xe1] sm:$0xff]
      %v471 = vld [vmem:[#allocation2 + $0xf1] sm:$0xff]
      %v472 = vld [vmem:[#allocation2 + $0xf9] sm:$0xff]
      %v473 = vld [vmem:[#allocation2 + $0x109] sm:$0xff]
      %v474 = vld [vmem:[#allocation2 + $0x111] sm:$0xff]
      %v475 = vld [vmem:[#allocation2 + $0x121] sm:$0xff]
      %v476 = vld [vmem:[#allocation2 + $0x129] sm:$0xff]
      %v477 = vld [vmem:[#allocation2 + $0x139] sm:$0xff]
      %v478 = vld [vmem:[#allocation2 + $0x141] sm:$0xff]
      %v479 = vld [vmem:[#allocation2 + $0x151] sm:$0xff]
      %v480 = vld [vmem:[#allocation2 + $0x159] sm:$0xff]
      %v481 = vld [vmem:[#allocation2 + $0x169] sm:$0xff]
      %v482 = vld [vmem:[#allocation2 + $0x171] sm:$0xff]
      %v483 = vlaneseq
      %v484 = vshrl.u32 %v483, 7
      %v485 = vsub.s32 1, %v484
      %v486 = vrot.slane %v341, %v485
      %v487 = vmul.f32 %v451, %v486
      %v488 = vmul.f32 %v452, %v486
      %v489 = vmul.f32 %v453, %v486
      %v490 = vmul.f32 %v454, %v486
      %v491 = vmul.f32 %v455, %v486
      %v492 = vmul.f32 %v456, %v486
      %v493 = vmul.f32 %v457, %v486
      %v494 = vmul.f32 %v458, %v486
      %v495 = vmul.f32 %v459, %v486
      %v496 = vmul.f32 %v460, %v486
      %v497 = vmul.f32 %v461, %v486
      %v498 = vmul.f32 %v462, %v486
      %v499 = vmul.f32 %v463, %v486
      %v500 = vmul.f32 %v464, %v486
      %v501 = vmul.f32 %v465, %v486
      %v502 = vmul.f32 %v466, %v486
      %v503 = vmul.f32 %v467, %v486
      %v504 = vmul.f32 %v468, %v486
      %v505 = vmul.f32 %v469, %v486
      %v506 = vmul.f32 %v470, %v486
      %v507 = vmul.f32 %v471, %v486
      %v508 = vmul.f32 %v472, %v486
      %v509 = vmul.f32 %v473, %v486
      %v510 = vmul.f32 %v474, %v486
      %v511 = vmul.f32 %v475, %v486
      %v512 = vmul.f32 %v476, %v486
      %v513 = vmul.f32 %v477, %v486
      %v514 = vmul.f32 %v478, %v486
      %v515 = vmul.f32 %v479, %v486
      %v516 = vmul.f32 %v480, %v486
      %v517 = vmul.f32 %v481, %v486
      %v518 = vmul.f32 %v482, %v486
      %v519 = vadd.f32 %v419, %v487
      %v520 = vadd.f32 %v420, %v488
      %v521 = vadd.f32 %v421, %v489
      %v522 = vadd.f32 %v422, %v490
      %v523 = vadd.f32 %v423, %v491
      %v524 = vadd.f32 %v424, %v492
      %v525 = vadd.f32 %v425, %v493
      %v526 = vadd.f32 %v426, %v494
      %v527 = vadd.f32 %v427, %v495
      %v528 = vadd.f32 %v428, %v496
      %v529 = vadd.f32 %v429, %v497
      %v530 = vadd.f32 %v430, %v498
      %v531 = vadd.f32 %v431, %v499
      %v532 = vadd.f32 %v432, %v500
      %v533 = vadd.f32 %v433, %v501
      %v534 = vadd.f32 %v434, %v502
      %v535 = vadd.f32 %v435, %v503
      %v536 = vadd.f32 %v436, %v504
      %v537 = vadd.f32 %v437, %v505
      %v538 = vadd.f32 %v438, %v506
      %v539 = vadd.f32 %v439, %v507
      %v540 = vadd.f32 %v440, %v508
      %v541 = vadd.f32 %v441, %v509
      %v542 = vadd.f32 %v442, %v510
      %v543 = vadd.f32 %v443, %v511
      %v544 = vadd.f32 %v444, %v512
      %v545 = vadd.f32 %v445, %v513
      %v546 = vadd.f32 %v446, %v514
      %v547 = vadd.f32 %v447, %v515
      %v548 = vadd.f32 %v448, %v516
      %v549 = vadd.f32 %v449, %v517
      %v550 = vadd.f32 %v450, %v518
      %v551 = vld [vmem:[#allocation2 + $0x2] sm:$0xff]
      %v552 = vld [vmem:[#allocation2 + $0xa] sm:$0xff]
      %v553 = vld [vmem:[#allocation2 + $0x1a] sm:$0xff]
      %v554 = vld [vmem:[#allocation2 + $0x22] sm:$0xff]
      %v555 = vld [vmem:[#allocation2 + $0x32] sm:$0xff]
      %v556 = vld [vmem:[#allocation2 + $0x3a] sm:$0xff]
      %v557 = vld [vmem:[#allocation2 + $0x4a] sm:$0xff]
      %v558 = vld [vmem:[#allocation2 + $0x52] sm:$0xff]
      %v559 = vld [vmem:[#allocation2 + $0x62] sm:$0xff]
      %v560 = vld [vmem:[#allocation2 + $0x6a] sm:$0xff]
      %v561 = vld [vmem:[#allocation2 + $0x7a] sm:$0xff]
      %v562 = vld [vmem:[#allocation2 + $0x82] sm:$0xff]
      %v563 = vld [vmem:[#allocation2 + $0x92] sm:$0xff]
      %v564 = vld [vmem:[#allocation2 + $0x9a] sm:$0xff]
      %v565 = vld [vmem:[#allocation2 + $0xaa] sm:$0xff]
      %v566 = vld [vmem:[#allocation2 + $0xb2] sm:$0xff]
      %v567 = vld [vmem:[#allocation2 + $0xc2] sm:$0xff]
      %v568 = vld [vmem:[#allocation2 + $0xca] sm:$0xff]
      %v569 = vld [vmem:[#allocation2 + $0xda] sm:$0xff]
      %v570 = vld [vmem:[#allocation2 + $0xe2] sm:$0xff]
      %v571 = vld [vmem:[#allocation2 + $0xf2] sm:$0xff]
      %v572 = vld [vmem:[#allocation2 + $0xfa] sm:$0xff]
      %v573 = vld [vmem:[#allocation2 + $0x10a] sm:$0xff]
      %v574 = vld [vmem:[#allocation2 + $0x112] sm:$0xff]
      %v575 = vld [vmem:[#allocation2 + $0x122] sm:$0xff]
      %v576 = vld [vmem:[#allocation2 + $0x12a] sm:$0xff]
      %v577 = vld [vmem:[#allocation2 + $0x13a] sm:$0xff]
      %v578 = vld [vmem:[#allocation2 + $0x142] sm:$0xff]
      %v579 = vld [vmem:[#allocation2 + $0x152] sm:$0xff]
      %v580 = vld [vmem:[#allocation2 + $0x15a] sm:$0xff]
      %v581 = vld [vmem:[#allocation2 + $0x16a] sm:$0xff]
      %v582 = vld [vmem:[#allocation2 + $0x172] sm:$0xff]
      %v583 = vlaneseq
      %v584 = vshrl.u32 %v583, 7
      %v585 = vsub.s32 2, %v584
      %v586 = vrot.slane %v341, %v585
      %v587 = vmul.f32 %v551, %v586
      %v588 = vmul.f32 %v552, %v586
      %v589 = vmul.f32 %v553, %v586
      %v590 = vmul.f32 %v554, %v586
      %v591 = vmul.f32 %v555, %v586
      %v592 = vmul.f32 %v556, %v586
      %v593 = vmul.f32 %v557, %v586
      %v594 = vmul.f32 %v558, %v586
      %v595 = vmul.f32 %v559, %v586
      %v596 = vmul.f32 %v560, %v586
      %v597 = vmul.f32 %v561, %v586
      %v598 = vmul.f32 %v562, %v586
      %v599 = vmul.f32 %v563, %v586
      %v600 = vmul.f32 %v564, %v586
      %v601 = vmul.f32 %v565, %v586
      %v602 = vmul.f32 %v566, %v586
      %v603 = vmul.f32 %v567, %v586
      %v604 = vmul.f32 %v568, %v586
      %v605 = vmul.f32 %v569, %v586
      %v606 = vmul.f32 %v570, %v586
      %v607 = vmul.f32 %v571, %v586
      %v608 = vmul.f32 %v572, %v586
      %v609 = vmul.f32 %v573, %v586
      %v610 = vmul.f32 %v574, %v586
      %v611 = vmul.f32 %v575, %v586
      %v612 = vmul.f32 %v576, %v586
      %v613 = vmul.f32 %v577, %v586
      %v614 = vmul.f32 %v578, %v586
      %v615 = vmul.f32 %v579, %v586
      %v616 = vmul.f32 %v580, %v586
      %v617 = vmul.f32 %v581, %v586
      %v618 = vmul.f32 %v582, %v586
      %v619 = vadd.f32 %v519, %v587
      %v620 = vadd.f32 %v520, %v588
      %v621 = vadd.f32 %v521, %v589
      %v622 = vadd.f32 %v522, %v590
      %v623 = vadd.f32 %v523, %v591
      %v624 = vadd.f32 %v524, %v592
      %v625 = vadd.f32 %v525, %v593
      %v626 = vadd.f32 %v526, %v594
      %v627 = vadd.f32 %v527, %v595
      %v628 = vadd.f32 %v528, %v596
      %v629 = vadd.f32 %v529, %v597
      %v630 = vadd.f32 %v530, %v598
      %v631 = vadd.f32 %v531, %v599
      %v632 = vadd.f32 %v532, %v600
      %v633 = vadd.f32 %v533, %v601
      %v634 = vadd.f32 %v534, %v602
      %v635 = vadd.f32 %v535, %v603
      %v636 = vadd.f32 %v536, %v604
      %v637 = vadd.f32 %v537, %v605
      %v638 = vadd.f32 %v538, %v606
      %v639 = vadd.f32 %v539, %v607
      %v640 = vadd.f32 %v540, %v608
      %v641 = vadd.f32 %v541, %v609
      %v642 = vadd.f32 %v542, %v610
      %v643 = vadd.f32 %v543, %v611
      %v644 = vadd.f32 %v544, %v612
      %v645 = vadd.f32 %v545, %v613
      %v646 = vadd.f32 %v546, %v614
      %v647 = vadd.f32 %v547, %v615
      %v648 = vadd.f32 %v548, %v616
      %v649 = vadd.f32 %v549, %v617
      %v650 = vadd.f32 %v550, %v618
      %v651 = vld [vmem:[%s308] sm:$0xff]
      %v652 = vld [vmem:[%s308 + $0x8] sm:$0xff]
      %v653 = vld [vmem:[%s308 + $0x18] sm:$0xff]
      %v654 = vld [vmem:[%s308 + $0x20] sm:$0xff]
      %v655 = vld [vmem:[%s308 + $0x30] sm:$0xff]
      %v656 = vld [vmem:[%s308 + $0x38] sm:$0xff]
      %v657 = vld [vmem:[%s308 + $0x48] sm:$0xff]
      %v658 = vld [vmem:[%s308 + $0x50] sm:$0xff]
      %v659 = vld [vmem:[%s308 + $0x60] sm:$0xff]
      %v660 = vld [vmem:[%s308 + $0x68] sm:$0xff]
      %v661 = vld [vmem:[%s308 + $0x78] sm:$0xff]
      %v662 = vld [vmem:[%s308 + $0x80] sm:$0xff]
      %v663 = vld [vmem:[%s308 + $0x90] sm:$0xff]
      %v664 = vld [vmem:[%s308 + $0x98] sm:$0xff]
      %v665 = vld [vmem:[%s308 + $0xa8] sm:$0xff]
      %v666 = vld [vmem:[%s308 + $0xb0] sm:$0xff]
      %v667 = vld [vmem:[%s308 + $0xc0] sm:$0xff]
      %v668 = vld [vmem:[%s308 + $0xc8] sm:$0xff]
      %v669 = vld [vmem:[%s308 + $0xd8] sm:$0xff]
      %v670 = vld [vmem:[%s308 + $0xe0] sm:$0xff]
      %v671 = vld [vmem:[%s308 + $0xf0] sm:$0xff]
      %v672 = vld [vmem:[%s308 + $0xf8] sm:$0xff]
      %v673 = vld [vmem:[%s308 + $0x108] sm:$0xff]
      %v674 = vld [vmem:[%s308 + $0x110] sm:$0xff]
      %v675 = vld [vmem:[%s308 + $0x120] sm:$0xff]
      %v676 = vld [vmem:[%s308 + $0x128] sm:$0xff]
      %v677 = vld [vmem:[%s308 + $0x138] sm:$0xff]
      %v678 = vld [vmem:[%s308 + $0x140] sm:$0xff]
      %v679 = vld [vmem:[%s308 + $0x150] sm:$0xff]
      %v680 = vld [vmem:[%s308 + $0x158] sm:$0xff]
      %v681 = vld [vmem:[%s308 + $0x168] sm:$0xff]
      %v682 = vld [vmem:[%s308 + $0x170] sm:$0xff]
      %v683 = vlaneseq
      %v684 = vshrl.u32 %v683, 7
      %v685 = vsub.s32 0, %v684
      %v686 = vrot.slane %v342, %v685
      %v687 = vmul.f32 %v651, %v686
      %v688 = vmul.f32 %v652, %v686
      %v689 = vmul.f32 %v653, %v686
      %v690 = vmul.f32 %v654, %v686
      %v691 = vmul.f32 %v655, %v686
      %v692 = vmul.f32 %v656, %v686
      %v693 = vmul.f32 %v657, %v686
      %v694 = vmul.f32 %v658, %v686
      %v695 = vmul.f32 %v659, %v686
      %v696 = vmul.f32 %v660, %v686
      %v697 = vmul.f32 %v661, %v686
      %v698 = vmul.f32 %v662, %v686
      %v699 = vmul.f32 %v663, %v686
      %v700 = vmul.f32 %v664, %v686
      %v701 = vmul.f32 %v665, %v686
      %v702 = vmul.f32 %v666, %v686
      %v703 = vmul.f32 %v667, %v686
      %v704 = vmul.f32 %v668, %v686
      %v705 = vmul.f32 %v669, %v686
      %v706 = vmul.f32 %v670, %v686
      %v707 = vmul.f32 %v671, %v686
      %v708 = vmul.f32 %v672, %v686
      %v709 = vmul.f32 %v673, %v686
      %v710 = vmul.f32 %v674, %v686
      %v711 = vmul.f32 %v675, %v686
      %v712 = vmul.f32 %v676, %v686
      %v713 = vmul.f32 %v677, %v686
      %v714 = vmul.f32 %v678, %v686
      %v715 = vmul.f32 %v679, %v686
      %v716 = vmul.f32 %v680, %v686
      %v717 = vmul.f32 %v681, %v686
      %v718 = vmul.f32 %v682, %v686
      %v719 = vadd.f32 %v619, %v687
      %v720 = vadd.f32 %v620, %v688
      %v721 = vadd.f32 %v621, %v689
      %v722 = vadd.f32 %v622, %v690
      %v723 = vadd.f32 %v623, %v691
      %v724 = vadd.f32 %v624, %v692
      %v725 = vadd.f32 %v625, %v693
      %v726 = vadd.f32 %v626, %v694
      %v727 = vadd.f32 %v627, %v695
      %v728 = vadd.f32 %v628, %v696
      %v729 = vadd.f32 %v629, %v697
      %v730 = vadd.f32 %v630, %v698
      %v731 = vadd.f32 %v631, %v699
      %v732 = vadd.f32 %v632, %v700
      %v733 = vadd.f32 %v633, %v701
      %v734 = vadd.f32 %v634, %v702
      %v735 = vadd.f32 %v635, %v703
      %v736 = vadd.f32 %v636, %v704
      %v737 = vadd.f32 %v637, %v705
      %v738 = vadd.f32 %v638, %v706
      %v739 = vadd.f32 %v639, %v707
      %v740 = vadd.f32 %v640, %v708
      %v741 = vadd.f32 %v641, %v709
      %v742 = vadd.f32 %v642, %v710
      %v743 = vadd.f32 %v643, %v711
      %v744 = vadd.f32 %v644, %v712
      %v745 = vadd.f32 %v645, %v713
      %v746 = vadd.f32 %v646, %v714
      %v747 = vadd.f32 %v647, %v715
      %v748 = vadd.f32 %v648, %v716
      %v749 = vadd.f32 %v649, %v717
      %v750 = vadd.f32 %v650, %v718
      %v751 = vld [vmem:[%s308 + $0x1] sm:$0xff]
      %v752 = vld [vmem:[%s308 + $0x9] sm:$0xff]
      %v753 = vld [vmem:[%s308 + $0x19] sm:$0xff]
      %v754 = vld [vmem:[%s308 + $0x21] sm:$0xff]
      %v755 = vld [vmem:[%s308 + $0x31] sm:$0xff]
      %v756 = vld [vmem:[%s308 + $0x39] sm:$0xff]
      %v757 = vld [vmem:[%s308 + $0x49] sm:$0xff]
      %v758 = vld [vmem:[%s308 + $0x51] sm:$0xff]
      %v759 = vld [vmem:[%s308 + $0x61] sm:$0xff]
      %v760 = vld [vmem:[%s308 + $0x69] sm:$0xff]
      %v761 = vld [vmem:[%s308 + $0x79] sm:$0xff]
      %v762 = vld [vmem:[%s308 + $0x81] sm:$0xff]
      %v763 = vld [vmem:[%s308 + $0x91] sm:$0xff]
      %v764 = vld [vmem:[%s308 + $0x99] sm:$0xff]
      %v765 = vld [vmem:[%s308 + $0xa9] sm:$0xff]
      %v766 = vld [vmem:[%s308 + $0xb1] sm:$0xff]
      %v767 = vld [vmem:[%s308 + $0xc1] sm:$0xff]
      %v768 = vld [vmem:[%s308 + $0xc9] sm:$0xff]
      %v769 = vld [vmem:[%s308 + $0xd9] sm:$0xff]
      %v770 = vld [vmem:[%s308 + $0xe1] sm:$0xff]
      %v771 = vld [vmem:[%s308 + $0xf1] sm:$0xff]
      %v772 = vld [vmem:[%s308 + $0xf9] sm:$0xff]
      %v773 = vld [vmem:[%s308 + $0x109] sm:$0xff]
      %v774 = vld [vmem:[%s308 + $0x111] sm:$0xff]
      %v775 = vld [vmem:[%s308 + $0x121] sm:$0xff]
      %v776 = vld [vmem:[%s308 + $0x129] sm:$0xff]
      %v777 = vld [vmem:[%s308 + $0x139] sm:$0xff]
      %v778 = vld [vmem:[%s308 + $0x141] sm:$0xff]
      %v779 = vld [vmem:[%s308 + $0x151] sm:$0xff]
      %v780 = vld [vmem:[%s308 + $0x159] sm:$0xff]
      %v781 = vld [vmem:[%s308 + $0x169] sm:$0xff]
      %v782 = vld [vmem:[%s308 + $0x171] sm:$0xff]
      %v783 = vlaneseq
      %v784 = vshrl.u32 %v783, 7
      %v785 = vsub.s32 1, %v784
      %v786 = vrot.slane %v342, %v785
      %v787 = vmul.f32 %v751, %v786
      %v788 = vmul.f32 %v752, %v786
      %v789 = vmul.f32 %v753, %v786
      %v790 = vmul.f32 %v754, %v786
      %v791 = vmul.f32 %v755, %v786
      %v792 = vmul.f32 %v756, %v786
      %v793 = vmul.f32 %v757, %v786
      %v794 = vmul.f32 %v758, %v786
      %v795 = vmul.f32 %v759, %v786
      %v796 = vmul.f32 %v760, %v786
      %v797 = vmul.f32 %v761, %v786
      %v798 = vmul.f32 %v762, %v786
      %v799 = vmul.f32 %v763, %v786
      %v800 = vmul.f32 %v764, %v786
      %v801 = vmul.f32 %v765, %v786
      %v802 = vmul.f32 %v766, %v786
      %v803 = vmul.f32 %v767, %v786
      %v804 = vmul.f32 %v768, %v786
      %v805 = vmul.f32 %v769, %v786
      %v806 = vmul.f32 %v770, %v786
      %v807 = vmul.f32 %v771, %v786
      %v808 = vmul.f32 %v772, %v786
      %v809 = vmul.f32 %v773, %v786
      %v810 = vmul.f32 %v774, %v786
      %v811 = vmul.f32 %v775, %v786
      %v812 = vmul.f32 %v776, %v786
      %v813 = vmul.f32 %v777, %v786
      %v814 = vmul.f32 %v778, %v786
      %v815 = vmul.f32 %v779, %v786
      %v816 = vmul.f32 %v780, %v786
      %v817 = vmul.f32 %v781, %v786
      %v818 = vmul.f32 %v782, %v786
      %v819 = vadd.f32 %v719, %v787
      %v820 = vadd.f32 %v720, %v788
      %v821 = vadd.f32 %v721, %v789
      %v822 = vadd.f32 %v722, %v790
      %v823 = vadd.f32 %v723, %v791
      %v824 = vadd.f32 %v724, %v792
      %v825 = vadd.f32 %v725, %v793
      %v826 = vadd.f32 %v726, %v794
      %v827 = vadd.f32 %v727, %v795
      %v828 = vadd.f32 %v728, %v796
      %v829 = vadd.f32 %v729, %v797
      %v830 = vadd.f32 %v730, %v798
      %v831 = vadd.f32 %v731, %v799
      %v832 = vadd.f32 %v732, %v800
      %v833 = vadd.f32 %v733, %v801
      %v834 = vadd.f32 %v734, %v802
      %v835 = vadd.f32 %v735, %v803
      %v836 = vadd.f32 %v736, %v804
      %v837 = vadd.f32 %v737, %v805
      %v838 = vadd.f32 %v738, %v806
      %v839 = vadd.f32 %v739, %v807
      %v840 = vadd.f32 %v740, %v808
      %v841 = vadd.f32 %v741, %v809
      %v842 = vadd.f32 %v742, %v810
      %v843 = vadd.f32 %v743, %v811
      %v844 = vadd.f32 %v744, %v812
      %v845 = vadd.f32 %v745, %v813
      %v846 = vadd.f32 %v746, %v814
      %v847 = vadd.f32 %v747, %v815
      %v848 = vadd.f32 %v748, %v816
      %v849 = vadd.f32 %v749, %v817
      %v850 = vadd.f32 %v750, %v818
      %v851 = vld [vmem:[%s308 + $0x2] sm:$0xff]
      %v852 = vld [vmem:[%s308 + $0xa] sm:$0xff]
      %v853 = vld [vmem:[%s308 + $0x1a] sm:$0xff]
      %v854 = vld [vmem:[%s308 + $0x22] sm:$0xff]
      %v855 = vld [vmem:[%s308 + $0x32] sm:$0xff]
      %v856 = vld [vmem:[%s308 + $0x3a] sm:$0xff]
      %v857 = vld [vmem:[%s308 + $0x4a] sm:$0xff]
      %v858 = vld [vmem:[%s308 + $0x52] sm:$0xff]
      %v859 = vld [vmem:[%s308 + $0x62] sm:$0xff]
      %v860 = vld [vmem:[%s308 + $0x6a] sm:$0xff]
      %v861 = vld [vmem:[%s308 + $0x7a] sm:$0xff]
      %v862 = vld [vmem:[%s308 + $0x82] sm:$0xff]
      %v863 = vld [vmem:[%s308 + $0x92] sm:$0xff]
      %v864 = vld [vmem:[%s308 + $0x9a] sm:$0xff]
      %v865 = vld [vmem:[%s308 + $0xaa] sm:$0xff]
      %v866 = vld [vmem:[%s308 + $0xb2] sm:$0xff]
      %v867 = vld [vmem:[%s308 + $0xc2] sm:$0xff]
      %v868 = vld [vmem:[%s308 + $0xca] sm:$0xff]
      %v869 = vld [vmem:[%s308 + $0xda] sm:$0xff]
      %v870 = vld [vmem:[%s308 + $0xe2] sm:$0xff]
      %v871 = vld [vmem:[%s308 + $0xf2] sm:$0xff]
      %v872 = vld [vmem:[%s308 + $0xfa] sm:$0xff]
      %v873 = vld [vmem:[%s308 + $0x10a] sm:$0xff]
      %v874 = vld [vmem:[%s308 + $0x112] sm:$0xff]
      %v875 = vld [vmem:[%s308 + $0x122] sm:$0xff]
      %v876 = vld [vmem:[%s308 + $0x12a] sm:$0xff]
      %v877 = vld [vmem:[%s308 + $0x13a] sm:$0xff]
      %v878 = vld [vmem:[%s308 + $0x142] sm:$0xff]
      %v879 = vld [vmem:[%s308 + $0x152] sm:$0xff]
      %v880 = vld [vmem:[%s308 + $0x15a] sm:$0xff]
      %v881 = vld [vmem:[%s308 + $0x16a] sm:$0xff]
      %v882 = vld [vmem:[%s308 + $0x172] sm:$0xff]
      %v883 = vlaneseq
      %v884 = vshrl.u32 %v883, 7
      %v885 = vsub.s32 2, %v884
      %v886 = vrot.slane %v342, %v885
      %v887 = vmul.f32 %v851, %v886
      %v888 = vmul.f32 %v852, %v886
      %v889 = vmul.f32 %v853, %v886
      %v890 = vmul.f32 %v854, %v886
      %v891 = vmul.f32 %v855, %v886
      %v892 = vmul.f32 %v856, %v886
      %v893 = vmul.f32 %v857, %v886
      %v894 = vmul.f32 %v858, %v886
      %v895 = vmul.f32 %v859, %v886
      %v896 = vmul.f32 %v860, %v886
      %v897 = vmul.f32 %v861, %v886
      %v898 = vmul.f32 %v862, %v886
      %v899 = vmul.f32 %v863, %v886
      %v900 = vmul.f32 %v864, %v886
      %v901 = vmul.f32 %v865, %v886
      %v902 = vmul.f32 %v866, %v886
      %v903 = vmul.f32 %v867, %v886
      %v904 = vmul.f32 %v868, %v886
      %v905 = vmul.f32 %v869, %v886
      %v906 = vmul.f32 %v870, %v886
      %v907 = vmul.f32 %v871, %v886
      %v908 = vmul.f32 %v872, %v886
      %v909 = vmul.f32 %v873, %v886
      %v910 = vmul.f32 %v874, %v886
      %v911 = vmul.f32 %v875, %v886
      %v912 = vmul.f32 %v876, %v886
      %v913 = vmul.f32 %v877, %v886
      %v914 = vmul.f32 %v878, %v886
      %v915 = vmul.f32 %v879, %v886
      %v916 = vmul.f32 %v880, %v886
      %v917 = vmul.f32 %v881, %v886
      %v918 = vmul.f32 %v882, %v886
      %v919 = vadd.f32 %v819, %v887
      %v920 = vadd.f32 %v820, %v888
      %v921 = vadd.f32 %v821, %v889
      %v922 = vadd.f32 %v822, %v890
      %v923 = vadd.f32 %v823, %v891
      %v924 = vadd.f32 %v824, %v892
      %v925 = vadd.f32 %v825, %v893
      %v926 = vadd.f32 %v826, %v894
      %v927 = vadd.f32 %v827, %v895
      %v928 = vadd.f32 %v828, %v896
      %v929 = vadd.f32 %v829, %v897
      %v930 = vadd.f32 %v830, %v898
      %v931 = vadd.f32 %v831, %v899
      %v932 = vadd.f32 %v832, %v900
      %v933 = vadd.f32 %v833, %v901
      %v934 = vadd.f32 %v834, %v902
      %v935 = vadd.f32 %v835, %v903
      %v936 = vadd.f32 %v836, %v904
      %v937 = vadd.f32 %v837, %v905
      %v938 = vadd.f32 %v838, %v906
      %v939 = vadd.f32 %v839, %v907
      %v940 = vadd.f32 %v840, %v908
      %v941 = vadd.f32 %v841, %v909
      %v942 = vadd.f32 %v842, %v910
      %v943 = vadd.f32 %v843, %v911
      %v944 = vadd.f32 %v844, %v912
      %v945 = vadd.f32 %v845, %v913
      %v946 = vadd.f32 %v846, %v914
      %v947 = vadd.f32 %v847, %v915
      %v948 = vadd.f32 %v848, %v916
      %v949 = vadd.f32 %v849, %v917
      %v950 = vadd.f32 %v850, %v918
      %s951 = scalar_lea.vmem [#allocation2], 48
      %v952 = vld [vmem:[%s951] sm:$0xff]
      %v953 = vld [vmem:[%s951 + $0x8] sm:$0xff]
      %v954 = vld [vmem:[%s951 + $0x18] sm:$0xff]
      %v955 = vld [vmem:[%s951 + $0x20] sm:$0xff]
      %v956 = vld [vmem:[%s951 + $0x30] sm:$0xff]
      %v957 = vld [vmem:[%s951 + $0x38] sm:$0xff]
      %v958 = vld [vmem:[%s951 + $0x48] sm:$0xff]
      %v959 = vld [vmem:[%s951 + $0x50] sm:$0xff]
      %v960 = vld [vmem:[%s951 + $0x60] sm:$0xff]
      %v961 = vld [vmem:[%s951 + $0x68] sm:$0xff]
      %v962 = vld [vmem:[%s951 + $0x78] sm:$0xff]
      %v963 = vld [vmem:[%s951 + $0x80] sm:$0xff]
      %v964 = vld [vmem:[%s951 + $0x90] sm:$0xff]
      %v965 = vld [vmem:[%s951 + $0x98] sm:$0xff]
      %v966 = vld [vmem:[%s951 + $0xa8] sm:$0xff]
      %v967 = vld [vmem:[%s951 + $0xb0] sm:$0xff]
      %v968 = vld [vmem:[%s951 + $0xc0] sm:$0xff]
      %v969 = vld [vmem:[%s951 + $0xc8] sm:$0xff]
      %v970 = vld [vmem:[%s951 + $0xd8] sm:$0xff]
      %v971 = vld [vmem:[%s951 + $0xe0] sm:$0xff]
      %v972 = vld [vmem:[%s951 + $0xf0] sm:$0xff]
      %v973 = vld [vmem:[%s951 + $0xf8] sm:$0xff]
      %v974 = vld [vmem:[%s951 + $0x108] sm:$0xff]
      %v975 = vld [vmem:[%s951 + $0x110] sm:$0xff]
      %v976 = vld [vmem:[%s951 + $0x120] sm:$0xff]
      %v977 = vld [vmem:[%s951 + $0x128] sm:$0xff]
      %v978 = vld [vmem:[%s951 + $0x138] sm:$0xff]
      %v979 = vld [vmem:[%s951 + $0x140] sm:$0xff]
      %v980 = vld [vmem:[%s951 + $0x150] sm:$0xff]
      %v981 = vld [vmem:[%s951 + $0x158] sm:$0xff]
      %v982 = vld [vmem:[%s951 + $0x168] sm:$0xff]
      %v983 = vld [vmem:[%s951 + $0x170] sm:$0xff]
      %v984 = vlaneseq
      %v985 = vshrl.u32 %v984, 7
      %v986 = vsub.s32 0, %v985
      %v987 = vrot.slane %v343, %v986
      %v988 = vmul.f32 %v952, %v987
      %v989 = vmul.f32 %v953, %v987
      %v990 = vmul.f32 %v954, %v987
      %v991 = vmul.f32 %v955, %v987
      %v992 = vmul.f32 %v956, %v987
      %v993 = vmul.f32 %v957, %v987
      %v994 = vmul.f32 %v958, %v987
      %v995 = vmul.f32 %v959, %v987
      %v996 = vmul.f32 %v960, %v987
      %v997 = vmul.f32 %v961, %v987
      %v998 = vmul.f32 %v962, %v987
      %v999 = vmul.f32 %v963, %v987
      %v1000 = vmul.f32 %v964, %v987
      %v1001 = vmul.f32 %v965, %v987
      %v1002 = vmul.f32 %v966, %v987
      %v1003 = vmul.f32 %v967, %v987
      %v1004 = vmul.f32 %v968, %v987
      %v1005 = vmul.f32 %v969, %v987
      %v1006 = vmul.f32 %v970, %v987
      %v1007 = vmul.f32 %v971, %v987
      %v1008 = vmul.f32 %v972, %v987
      %v1009 = vmul.f32 %v973, %v987
      %v1010 = vmul.f32 %v974, %v987
      %v1011 = vmul.f32 %v975, %v987
      %v1012 = vmul.f32 %v976, %v987
      %v1013 = vmul.f32 %v977, %v987
      %v1014 = vmul.f32 %v978, %v987
      %v1015 = vmul.f32 %v979, %v987
      %v1016 = vmul.f32 %v980, %v987
      %v1017 = vmul.f32 %v981, %v987
      %v1018 = vmul.f32 %v982, %v987
      %v1019 = vmul.f32 %v983, %v987
      %v1020 = vadd.f32 %v919, %v988
      %v1021 = vadd.f32 %v920, %v989
      %v1022 = vadd.f32 %v921, %v990
      %v1023 = vadd.f32 %v922, %v991
      %v1024 = vadd.f32 %v923, %v992
      %v1025 = vadd.f32 %v924, %v993
      %v1026 = vadd.f32 %v925, %v994
      %v1027 = vadd.f32 %v926, %v995
      %v1028 = vadd.f32 %v927, %v996
      %v1029 = vadd.f32 %v928, %v997
      %v1030 = vadd.f32 %v929, %v998
      %v1031 = vadd.f32 %v930, %v999
      %v1032 = vadd.f32 %v931, %v1000
      %v1033 = vadd.f32 %v932, %v1001
      %v1034 = vadd.f32 %v933, %v1002
      %v1035 = vadd.f32 %v934, %v1003
      %v1036 = vadd.f32 %v935, %v1004
      %v1037 = vadd.f32 %v936, %v1005
      %v1038 = vadd.f32 %v937, %v1006
      %v1039 = vadd.f32 %v938, %v1007
      %v1040 = vadd.f32 %v939, %v1008
      %v1041 = vadd.f32 %v940, %v1009
      %v1042 = vadd.f32 %v941, %v1010
      %v1043 = vadd.f32 %v942, %v1011
      %v1044 = vadd.f32 %v943, %v1012
      %v1045 = vadd.f32 %v944, %v1013
      %v1046 = vadd.f32 %v945, %v1014
      %v1047 = vadd.f32 %v946, %v1015
      %v1048 = vadd.f32 %v947, %v1016
      %v1049 = vadd.f32 %v948, %v1017
      %v1050 = vadd.f32 %v949, %v1018
      %v1051 = vadd.f32 %v950, %v1019
      %v1052 = vld [vmem:[%s951 + $0x1] sm:$0xff]
      %v1053 = vld [vmem:[%s951 + $0x9] sm:$0xff]
      %v1054 = vld [vmem:[%s951 + $0x19] sm:$0xff]
      %v1055 = vld [vmem:[%s951 + $0x21] sm:$0xff]
      %v1056 = vld [vmem:[%s951 + $0x31] sm:$0xff]
      %v1057 = vld [vmem:[%s951 + $0x39] sm:$0xff]
      %v1058 = vld [vmem:[%s951 + $0x49] sm:$0xff]
      %v1059 = vld [vmem:[%s951 + $0x51] sm:$0xff]
      %v1060 = vld [vmem:[%s951 + $0x61] sm:$0xff]
      %v1061 = vld [vmem:[%s951 + $0x69] sm:$0xff]
      %v1062 = vld [vmem:[%s951 + $0x79] sm:$0xff]
      %v1063 = vld [vmem:[%s951 + $0x81] sm:$0xff]
      %v1064 = vld [vmem:[%s951 + $0x91] sm:$0xff]
      %v1065 = vld [vmem:[%s951 + $0x99] sm:$0xff]
      %v1066 = vld [vmem:[%s951 + $0xa9] sm:$0xff]
      %v1067 = vld [vmem:[%s951 + $0xb1] sm:$0xff]
      %v1068 = vld [vmem:[%s951 + $0xc1] sm:$0xff]
      %v1069 = vld [vmem:[%s951 + $0xc9] sm:$0xff]
      %v1070 = vld [vmem:[%s951 + $0xd9] sm:$0xff]
      %v1071 = vld [vmem:[%s951 + $0xe1] sm:$0xff]
      %v1072 = vld [vmem:[%s951 + $0xf1] sm:$0xff]
      %v1073 = vld [vmem:[%s951 + $0xf9] sm:$0xff]
      %v1074 = vld [vmem:[%s951 + $0x109] sm:$0xff]
      %v1075 = vld [vmem:[%s951 + $0x111] sm:$0xff]
      %v1076 = vld [vmem:[%s951 + $0x121] sm:$0xff]
      %v1077 = vld [vmem:[%s951 + $0x129] sm:$0xff]
      %v1078 = vld [vmem:[%s951 + $0x139] sm:$0xff]
      %v1079 = vld [vmem:[%s951 + $0x141] sm:$0xff]
      %v1080 = vld [vmem:[%s951 + $0x151] sm:$0xff]
      %v1081 = vld [vmem:[%s951 + $0x159] sm:$0xff]
      %v1082 = vld [vmem:[%s951 + $0x169] sm:$0xff]
      %v1083 = vld [vmem:[%s951 + $0x171] sm:$0xff]
      %v1084 = vlaneseq
      %v1085 = vshrl.u32 %v1084, 7
      %v1086 = vsub.s32 1, %v1085
      %v1087 = vrot.slane %v343, %v1086
      %v1088 = vmul.f32 %v1052, %v1087
      %v1089 = vmul.f32 %v1053, %v1087
      %v1090 = vmul.f32 %v1054, %v1087
      %v1091 = vmul.f32 %v1055, %v1087
      %v1092 = vmul.f32 %v1056, %v1087
      %v1093 = vmul.f32 %v1057, %v1087
      %v1094 = vmul.f32 %v1058, %v1087
      %v1095 = vmul.f32 %v1059, %v1087
      %v1096 = vmul.f32 %v1060, %v1087
      %v1097 = vmul.f32 %v1061, %v1087
      %v1098 = vmul.f32 %v1062, %v1087
      %v1099 = vmul.f32 %v1063, %v1087
      %v1100 = vmul.f32 %v1064, %v1087
      %v1101 = vmul.f32 %v1065, %v1087
      %v1102 = vmul.f32 %v1066, %v1087
      %v1103 = vmul.f32 %v1067, %v1087
      %v1104 = vmul.f32 %v1068, %v1087
      %v1105 = vmul.f32 %v1069, %v1087
      %v1106 = vmul.f32 %v1070, %v1087
      %v1107 = vmul.f32 %v1071, %v1087
      %v1108 = vmul.f32 %v1072, %v1087
      %v1109 = vmul.f32 %v1073, %v1087
      %v1110 = vmul.f32 %v1074, %v1087
      %v1111 = vmul.f32 %v1075, %v1087
      %v1112 = vmul.f32 %v1076, %v1087
      %v1113 = vmul.f32 %v1077, %v1087
      %v1114 = vmul.f32 %v1078, %v1087
      %v1115 = vmul.f32 %v1079, %v1087
      %v1116 = vmul.f32 %v1080, %v1087
      %v1117 = vmul.f32 %v1081, %v1087
      %v1118 = vmul.f32 %v1082, %v1087
      %v1119 = vmul.f32 %v1083, %v1087
      %v1120 = vadd.f32 %v1020, %v1088
      %v1121 = vadd.f32 %v1021, %v1089
      %v1122 = vadd.f32 %v1022, %v1090
      %v1123 = vadd.f32 %v1023, %v1091
      %v1124 = vadd.f32 %v1024, %v1092
      %v1125 = vadd.f32 %v1025, %v1093
      %v1126 = vadd.f32 %v1026, %v1094
      %v1127 = vadd.f32 %v1027, %v1095
      %v1128 = vadd.f32 %v1028, %v1096
      %v1129 = vadd.f32 %v1029, %v1097
      %v1130 = vadd.f32 %v1030, %v1098
      %v1131 = vadd.f32 %v1031, %v1099
      %v1132 = vadd.f32 %v1032, %v1100
      %v1133 = vadd.f32 %v1033, %v1101
      %v1134 = vadd.f32 %v1034, %v1102
      %v1135 = vadd.f32 %v1035, %v1103
      %v1136 = vadd.f32 %v1036, %v1104
      %v1137 = vadd.f32 %v1037, %v1105
      %v1138 = vadd.f32 %v1038, %v1106
      %v1139 = vadd.f32 %v1039, %v1107
      %v1140 = vadd.f32 %v1040, %v1108
      %v1141 = vadd.f32 %v1041, %v1109
      %v1142 = vadd.f32 %v1042, %v1110
      %v1143 = vadd.f32 %v1043, %v1111
      %v1144 = vadd.f32 %v1044, %v1112
      %v1145 = vadd.f32 %v1045, %v1113
      %v1146 = vadd.f32 %v1046, %v1114
      %v1147 = vadd.f32 %v1047, %v1115
      %v1148 = vadd.f32 %v1048, %v1116
      %v1149 = vadd.f32 %v1049, %v1117
      %v1150 = vadd.f32 %v1050, %v1118
      %v1151 = vadd.f32 %v1051, %v1119
      %v1152 = vld [vmem:[%s951 + $0x2] sm:$0xff]
      %v1153 = vld [vmem:[%s951 + $0xa] sm:$0xff]
      %v1154 = vld [vmem:[%s951 + $0x1a] sm:$0xff]
      %v1155 = vld [vmem:[%s951 + $0x22] sm:$0xff]
      %v1156 = vld [vmem:[%s951 + $0x32] sm:$0xff]
      %v1157 = vld [vmem:[%s951 + $0x3a] sm:$0xff]
      %v1158 = vld [vmem:[%s951 + $0x4a] sm:$0xff]
      %v1159 = vld [vmem:[%s951 + $0x52] sm:$0xff]
      %v1160 = vld [vmem:[%s951 + $0x62] sm:$0xff]
      %v1161 = vld [vmem:[%s951 + $0x6a] sm:$0xff]
      %v1162 = vld [vmem:[%s951 + $0x7a] sm:$0xff]
      %v1163 = vld [vmem:[%s951 + $0x82] sm:$0xff]
      %v1164 = vld [vmem:[%s951 + $0x92] sm:$0xff]
      %v1165 = vld [vmem:[%s951 + $0x9a] sm:$0xff]
      %v1166 = vld [vmem:[%s951 + $0xaa] sm:$0xff]
      %v1167 = vld [vmem:[%s951 + $0xb2] sm:$0xff]
      %v1168 = vld [vmem:[%s951 + $0xc2] sm:$0xff]
      %v1169 = vld [vmem:[%s951 + $0xca] sm:$0xff]
      %v1170 = vld [vmem:[%s951 + $0xda] sm:$0xff]
      %v1171 = vld [vmem:[%s951 + $0xe2] sm:$0xff]
      %v1172 = vld [vmem:[%s951 + $0xf2] sm:$0xff]
      %v1173 = vld [vmem:[%s951 + $0xfa] sm:$0xff]
      %v1174 = vld [vmem:[%s951 + $0x10a] sm:$0xff]
      %v1175 = vld [vmem:[%s951 + $0x112] sm:$0xff]
      %v1176 = vld [vmem:[%s951 + $0x122] sm:$0xff]
      %v1177 = vld [vmem:[%s951 + $0x12a] sm:$0xff]
      %v1178 = vld [vmem:[%s951 + $0x13a] sm:$0xff]
      %v1179 = vld [vmem:[%s951 + $0x142] sm:$0xff]
      %v1180 = vld [vmem:[%s951 + $0x152] sm:$0xff]
      %v1181 = vld [vmem:[%s951 + $0x15a] sm:$0xff]
      %v1182 = vld [vmem:[%s951 + $0x16a] sm:$0xff]
      %v1183 = vld [vmem:[%s951 + $0x172] sm:$0xff]
      %v1184 = vlaneseq
      %v1185 = vshrl.u32 %v1184, 7
      %v1186 = vsub.s32 2, %v1185
      %v1187 = vrot.slane %v343, %v1186
      %v1188 = vmul.f32 %v1152, %v1187
      %v1189 = vmul.f32 %v1153, %v1187
      %v1190 = vmul.f32 %v1154, %v1187
      %v1191 = vmul.f32 %v1155, %v1187
      %v1192 = vmul.f32 %v1156, %v1187
      %v1193 = vmul.f32 %v1157, %v1187
      %v1194 = vmul.f32 %v1158, %v1187
      %v1195 = vmul.f32 %v1159, %v1187
      %v1196 = vmul.f32 %v1160, %v1187
      %v1197 = vmul.f32 %v1161, %v1187
      %v1198 = vmul.f32 %v1162, %v1187
      %v1199 = vmul.f32 %v1163, %v1187
      %v1200 = vmul.f32 %v1164, %v1187
      %v1201 = vmul.f32 %v1165, %v1187
      %v1202 = vmul.f32 %v1166, %v1187
      %v1203 = vmul.f32 %v1167, %v1187
      %v1204 = vmul.f32 %v1168, %v1187
      %v1205 = vmul.f32 %v1169, %v1187
      %v1206 = vmul.f32 %v1170, %v1187
      %v1207 = vmul.f32 %v1171, %v1187
      %v1208 = vmul.f32 %v1172, %v1187
      %v1209 = vmul.f32 %v1173, %v1187
      %v1210 = vmul.f32 %v1174, %v1187
      %v1211 = vmul.f32 %v1175, %v1187
      %v1212 = vmul.f32 %v1176, %v1187
      %v1213 = vmul.f32 %v1177, %v1187
      %v1214 = vmul.f32 %v1178, %v1187
      %v1215 = vmul.f32 %v1179, %v1187
      %v1216 = vmul.f32 %v1180, %v1187
      %v1217 = vmul.f32 %v1181, %v1187
      %v1218 = vmul.f32 %v1182, %v1187
      %v1219 = vmul.f32 %v1183, %v1187
      %v1220 = vadd.f32 %v1120, %v1188
      %v1221 = vadd.f32 %v1121, %v1189
      %v1222 = vadd.f32 %v1122, %v1190
      %v1223 = vadd.f32 %v1123, %v1191
      %v1224 = vadd.f32 %v1124, %v1192
      %v1225 = vadd.f32 %v1125, %v1193
      %v1226 = vadd.f32 %v1126, %v1194
      %v1227 = vadd.f32 %v1127, %v1195
      %v1228 = vadd.f32 %v1128, %v1196
      %v1229 = vadd.f32 %v1129, %v1197
      %v1230 = vadd.f32 %v1130, %v1198
      %v1231 = vadd.f32 %v1131, %v1199
      %v1232 = vadd.f32 %v1132, %v1200
      %v1233 = vadd.f32 %v1133, %v1201
      %v1234 = vadd.f32 %v1134, %v1202
      %v1235 = vadd.f32 %v1135, %v1203
      %v1236 = vadd.f32 %v1136, %v1204
      %v1237 = vadd.f32 %v1137, %v1205
      %v1238 = vadd.f32 %v1138, %v1206
      %v1239 = vadd.f32 %v1139, %v1207
      %v1240 = vadd.f32 %v1140, %v1208
      %v1241 = vadd.f32 %v1141, %v1209
      %v1242 = vadd.f32 %v1142, %v1210
      %v1243 = vadd.f32 %v1143, %v1211
      %v1244 = vadd.f32 %v1144, %v1212
      %v1245 = vadd.f32 %v1145, %v1213
      %v1246 = vadd.f32 %v1146, %v1214
      %v1247 = vadd.f32 %v1147, %v1215
      %v1248 = vadd.f32 %v1148, %v1216
      %v1249 = vadd.f32 %v1149, %v1217
      %v1250 = vadd.f32 %v1150, %v1218
      %v1251 = vadd.f32 %v1151, %v1219
      %1252 = vst [vmem:[%s232] sm:$0xff] %v1220
      %1253 = vst [vmem:[%s232 + $0x8] sm:$0xff] %v1221
      %1254 = vst [vmem:[%s232 + $0x10] sm:$0xff] %v1222
      %1255 = vst [vmem:[%s232 + $0x18] sm:$0xff] %v1223
      %1256 = vst [vmem:[%s232 + $0x20] sm:$0xff] %v1224
      %1257 = vst [vmem:[%s232 + $0x28] sm:$0xff] %v1225
      %1258 = vst [vmem:[%s232 + $0x30] sm:$0xff] %v1226
      %1259 = vst [vmem:[%s232 + $0x38] sm:$0xff] %v1227
      %1260 = vst [vmem:[%s232 + $0x40] sm:$0xff] %v1228
      %1261 = vst [vmem:[%s232 + $0x48] sm:$0xff] %v1229
      %1262 = vst [vmem:[%s232 + $0x50] sm:$0xff] %v1230
      %1263 = vst [vmem:[%s232 + $0x58] sm:$0xff] %v1231
      %1264 = vst [vmem:[%s232 + $0x60] sm:$0xff] %v1232
      %1265 = vst [vmem:[%s232 + $0x68] sm:$0xff] %v1233
      %1266 = vst [vmem:[%s232 + $0x70] sm:$0xff] %v1234
      %1267 = vst [vmem:[%s232 + $0x78] sm:$0xff] %v1235
      %1268 = vst [vmem:[%s232 + $0x80] sm:$0xff] %v1236
      %1269 = vst [vmem:[%s232 + $0x88] sm:$0xff] %v1237
      %1270 = vst [vmem:[%s232 + $0x90] sm:$0xff] %v1238
      %1271 = vst [vmem:[%s232 + $0x98] sm:$0xff] %v1239
      %1272 = vst [vmem:[%s232 + $0xa0] sm:$0xff] %v1240
      %1273 = vst [vmem:[%s232 + $0xa8] sm:$0xff] %v1241
      %1274 = vst [vmem:[%s232 + $0xb0] sm:$0xff] %v1242
      %1275 = vst [vmem:[%s232 + $0xb8] sm:$0xff] %v1243
      %1276 = vst [vmem:[%s232 + $0xc0] sm:$0xff] %v1244
      %1277 = vst [vmem:[%s232 + $0xc8] sm:$0xff] %v1245
      %1278 = vst [vmem:[%s232 + $0xd0] sm:$0xff] %v1246
      %1279 = vst [vmem:[%s232 + $0xd8] sm:$0xff] %v1247
      %1280 = vst [vmem:[%s232 + $0xe0] sm:$0xff] %v1248
      %1281 = vst [vmem:[%s232 + $0xe8] sm:$0xff] %v1249
      %1282 = vst [vmem:[%s232 + $0xf0] sm:$0xff] %v1250
      %1283 = vst [vmem:[%s232 + $0xf8] sm:$0xff] %v1251
      %p1284 = scmp.lt.s32.totalorder %s18, 1
      %s1285 = scalar_select %p1284, %s18, 1
      %p1286 = scmp.lt.s32.totalorder %s19, 0
      %s1287 = scalar_select %p1286, %s19, 0
      %s1288 = smul.addr %s1285, 32
      %s1289 = sadd.s32 %s1287, %s1288
      %s1290 = smul.addr %s1289, 8
      %s1291 = scalar_lea.vmem %s3, %s1290
      // Predicated region
      $region33: #{dwconv.1} parent=31 // pred_check
        %p1292 = pneg %p126
      $region34: #{dwconv.1} parent=31 // pred_check_branch
        %1294 = sbr.rel (%p1292) target = $region36
      $region35: #{dwconv.1} parent=31 // pred_region
        _
      $region36: #{dwconv.1} parent=31 // pred_fallthru
        _
    $region32: #{dwconv.1} parent=5 // pred_fallthru
      _
    %p1295 = scmp.le.s32.totalorder 2, %s9
    // Predicated region
    $region37: #{dwconv.1} parent=5 // pred_check
      %p1296 = pneg %p1295
    $region38: #{dwconv.1} parent=5 // pred_check_branch
      %1298 = sbr.rel (%p1296) target = $region40
    $region39: #{dwconv.1} parent=5 // pred_region
      %s1299 = ssub.s32 %s9, 2
      // Predicated region
      $region41: #{dwconv.1} parent=39 // pred_check
        %p1300 = pneg %p132
      $region42: #{dwconv.1} parent=39 // pred_check_branch
        %1302 = sbr.rel (%p1300) target = $region44
      $region43: #{dwconv.1} parent=39 // pred_region
        %p1303 = scmp.lt.s32.totalorder %s20, 1
        %s1304 = scalar_select %p1303, %s20, 1
        %p1305 = scmp.lt.s32.totalorder %s21, 0
        %s1306 = scalar_select %p1305, %s21, 0
        %s1307 = smul.addr %s1304, 32
        %s1308 = sadd.s32 %s1306, %s1307
        %s1309 = smul.addr %s1308, 8
        %s1310 = scalar_lea.vmem %s3, %s1309
      $region44: #{dwconv.1} parent=39 // pred_fallthru
        _
    $region40: #{dwconv.1} parent=5 // pred_fallthru
      _
  $region6: #{dwconv.1} parent=0 // loop_footer
    %s13 = sadd.s32 1, %s9
  $region7: #{dwconv.1} parent=0 // loop_footer_branch
    %8 = sbr.rel target = $region3
  $region8: #{dwconv.1} parent=0 // loop_exit
    _

</llo_original>
